<compile_context>
chip_gen: v7x
topology: tpu7x:2x2x1
jax: 0.10.0
libtpu: 0.0.40
codegen_flags: <defaults>
</compile_context>

<pallas_src>
import jax
import jax.numpy as jnp
from jax.experimental import pallas as pl
from jax.experimental.pallas import tpu as pltpu

N, CIN, COUT = 2, 4, 8
H = W = 16
DIL = 2  # dilation_rate


# ------------------------------ fused kernel (single invocation) ------------------------------
def spatial_attention_kernel(x_ref, b1m_ref, b1w_ref, mavg_ref, b2m_ref, b3m_ref,
                             trep_ref, sc_ref, o_ref,
                             z1_ref, m_ref, z2_ref, a_ref, z3_ref):
    # x_ref: (N, CIN, H, W) VMEM         o_ref: (N*H, COUT*W) = (32, 128) VMEM (lane-dense)
    # b1m_ref: (256, 128)  banded 3x3 weights      b1w_ref: (1, 128) bias row
    # mavg_ref: (128, 16)  channel-mean matrix     trep_ref: (16, 128) attn replication matrix
    # b2m_ref/b3m_ref: (128, 16) banded 7x7 / dilated-7x7 weights
    # sc_ref: SMEM f32[3] = [b2, prelu_alpha, b3]
    f32 = jnp.float32

    # -------- stage 1: 3x3 conv (pad=1) + bias, as one MXU matmul --------
    # Z1[n*H+i, (c*3+kh)*W + j'] = x[n, c, i+kh-1, j']   (zero outside the image);
    # the horizontal taps and horizontal zero padding live in the banded matrix b1m.
    z1_ref[...] = jnp.zeros_like(z1_ref)
    for n in range(N):
        for c in range(CIN):
            for kh in range(3):
                d = kh - 1
                r0, r1 = max(0, -d), H - max(0, d)      # rows written in Z1
                s0, s1 = max(0, d), H - max(0, -d)      # rows read from x (ref slice, not value slice)
                col = (c * 3 + kh) * W
                z1_ref[n * H + r0:n * H + r1, col:col + W] = x_ref[n, c, s0:s1, :]
    # y: (N*H, COUT*W) = (32, 128), lane-dense; stays live until the final multiply.
    y = jnp.dot(z1_ref[...], b1m_ref[...], preferred_element_type=f32) + b1w_ref[...]

    # -------- ChannelPooling: mean over the COUT lane-groups, as a matmul --------
    m_ref[...] = jnp.dot(y, mavg_ref[...], preferred_element_type=f32)          # (32, 16)

    # helper: pack the 7 vertically shifted copies of a (N*H, W) map into a (N*H, 7*W) slab
    def build_shift_slab(z_ref, src_ref, dil):
        z_ref[...] = jnp.zeros_like(z_ref)
        for n in range(N):
            for kh in range(7):
                d = dil * (kh - 3)
                r0, r1 = max(0, -d), H - max(0, d)
                s0, s1 = max(0, d), H - max(0, -d)
                z_ref[n * H + r0:n * H + r1, kh * W:kh * W + W] = \
                    src_ref[n * H + s0:n * H + s1, :]

    # -------- stage 2: 7x7 conv (pad=3) + bias + PReLU --------
    build_shift_slab(z2_ref, m_ref, 1)
    a = jnp.dot(z2_ref[...], b2m_ref[...], preferred_element_type=f32) + sc_ref[0]
    a_ref[...] = jnp.where(a >= 0.0, a, sc_ref[1] * a)                           # (32, 16)

    # -------- stage 3: dilated 7x7 conv (dil=2, pad=6) + bias + sigmoid --------
    build_shift_slab(z3_ref, a_ref, DIL)
    s = jnp.dot(z3_ref[...], b3m_ref[...], preferred_element_type=f32) + sc_ref[2]
    gain = 1.0 + jax.nn.sigmoid(s)                                               # (32, 16)

    # -------- combine: out = y * (1 + attn), attn replicated across the COUT lane groups --------
    o_ref[...] = y * jnp.dot(gain, trep_ref[...], preferred_element_type=f32)


# ------------------------------ wrapper (weight preprocessing + layout plumbing) ------------------------------
def _band_matrix(w_row, ksize, pad, dil, width):
    """(width, width) matrix M with M[j_in, j_out] = w_row[kw] where j_in = j_out + kw*dil - pad."""
    j_in = jnp.arange(width)[:, None]
    j_out = jnp.arange(width)[None, :]
    num = j_in - j_out + pad
    kw = num // dil
    valid = (num % dil == 0) & (kw >= 0) & (kw < ksize)
    return jnp.where(valid, w_row[jnp.clip(kw, 0, ksize - 1)], 0.0).astype(jnp.float32)


def spatial_attention(x, params):
    w1, b1, w2, b2, alpha, w3, b3 = params
    n, cin, h, w = x.shape
    f32 = jnp.float32

    # Banded weight matrices (built once, outside the kernel).
    blocks = []
    for c in range(cin):
        for kh in range(3):
            blocks.append(jnp.concatenate(
                [_band_matrix(w1[o, c, kh], 3, 1, 1, w) for o in range(COUT)], axis=1))
    b1m = jnp.concatenate(blocks, axis=0)                                        # (cin*3*W, COUT*W)
    b2m = jnp.concatenate([_band_matrix(w2[0, 0, kh], 7, 3, 1, w)
                           for kh in range(7)], axis=0)                          # (7*W, W)
    b3m = jnp.concatenate([_band_matrix(w3[0, 0, kh], 7, 3 * DIL, DIL, w)
                           for kh in range(7)], axis=0)                          # (7*W, W)

    # Pad contracting dims up to multiples of 128 so every MXU operand is tile-aligned.
    k1, k2 = b1m.shape[0], b2m.shape[0]
    k1p = ((k1 + 127) // 128) * 128
    k2p = ((k2 + 127) // 128) * 128
    b1m = jnp.pad(b1m, ((0, k1p - k1), (0, 0)))
    b2m = jnp.pad(b2m, ((0, k2p - k2), (0, 0)))
    b3m = jnp.pad(b3m, ((0, k2p - k2), (0, 0)))

    b1w = jnp.repeat(b1, w)[None, :].astype(f32)                                 # (1, COUT*W) bias row
    mavg = jnp.tile(jnp.eye(w, dtype=f32), (COUT, 1)) / COUT                     # (COUT*W, W) channel mean
    trep = jnp.tile(jnp.eye(w, dtype=f32), (1, COUT))                            # (W, COUT*W) replicate attn
    scalars = jnp.concatenate([b2, alpha, b3]).astype(f32)                       # [b2, prelu_alpha, b3]

    vmem = pl.BlockSpec(memory_space=pltpu.MemorySpace.VMEM)
    smem = pl.BlockSpec(memory_space=pltpu.MemorySpace.SMEM)

    out_flat = pl.pallas_call(
        spatial_attention_kernel,
        out_shape=jax.ShapeDtypeStruct((n * h, COUT * w), f32),
        in_specs=[vmem] * 7 + [smem],
        out_specs=vmem,
        scratch_shapes=[
            pltpu.VMEM((n * h, k1p), f32),   # Z1: im2col slab for the 3x3 conv
            pltpu.VMEM((n * h, w), f32),     # m : channel-pooled map
            pltpu.VMEM((n * h, k2p), f32),   # Z2: slab for the 7x7 conv
            pltpu.VMEM((n * h, w), f32),     # a : PReLU map
            pltpu.VMEM((n * h, k2p), f32),   # Z3: slab for the dilated 7x7 conv
        ],
    )(x, b1m, b1w, mavg, b2m, b3m, trep, scalars)

    # (N*H, COUT*W) -> (N, COUT, H, W): layout plumbing only.
    return out_flat.reshape(n, h, COUT, w).transpose(0, 2, 1, 3)


# ------------------------------ pure-JAX reference for validation ------------------------------
def ref_forward(x, params):
    w1, b1, w2, b2, alpha, w3, b3 = params
    dn = ("NCHW", "OIHW", "NCHW")
    prec = jax.lax.Precision.HIGHEST
    y = jax.lax.conv_general_dilated(x, w1, (1, 1), [(1, 1), (1, 1)],
                                     dimension_numbers=dn, precision=prec) + b1.reshape(1, -1, 1, 1)
    m = jnp.mean(y, axis=1, keepdims=True)
    a = jax.lax.conv_general_dilated(m, w2, (1, 1), [(3, 3), (3, 3)],
                                     dimension_numbers=dn, precision=prec) + b2.reshape(1, 1, 1, 1)
    a = jnp.where(a >= 0.0, a, alpha[0] * a)
    a = jax.lax.conv_general_dilated(a, w3, (1, 1), [(6, 6), (6, 6)],
                                     rhs_dilation=(2, 2), dimension_numbers=dn,
                                     precision=prec) + b3.reshape(1, 1, 1, 1)
    attn = jax.nn.sigmoid(a)
    return y + y * attn


if __name__ == "__main__":
    key = jax.random.PRNGKey(0)
    ks = jax.random.split(key, 7)
    x = jax.random.normal(ks[0], (N, CIN, H, W), jnp.float32)

    # deterministic synthetic parameters (shapes per nn.Conv2d / nn.PReLU in __init__)
    w1 = jax.random.normal(ks[1], (COUT, CIN, 3, 3), jnp.float32) * 0.1
    b1 = jax.random.normal(ks[2], (COUT,), jnp.float32) * 0.1
    w2 = jax.random.normal(ks[3], (1, 1, 7, 7), jnp.float32) * 0.1
    b2 = jax.random.normal(ks[4], (1,), jnp.float32) * 0.1
    alpha = jnp.array([0.25], jnp.float32)          # nn.PReLU default init
    w3 = jax.random.normal(ks[5], (1, 1, 7, 7), jnp.float32) * 0.1
    b3 = jax.random.normal(ks[6], (1,), jnp.float32) * 0.1
    params = (w1, b1, w2, b2, alpha, w3, b3)

    out = spatial_attention(x, params)
    out = jax.block_until_ready(out)

    ref = ref_forward(x, params)
    err = float(jnp.max(jnp.abs(out - ref)))
    # expected error ~1e-5; margin covers MXU multi-pass f32 accumulation-order differences
    assert jnp.allclose(out, ref, atol=1e-3, rtol=1e-3), f"max abs err {err}"
    print("KERNEL_OK")
</pallas_src>

<mosaic_0001>
module attributes {stable_mosaic.version = 11 : i64} {
  func.func @spatial_attention_kernel(%arg0: memref<2x4x16x16xf32, #tpu.memory_space<vmem>>, %arg1: memref<256x128xf32, #tpu.memory_space<vmem>>, %arg2: memref<1x128xf32, #tpu.memory_space<vmem>>, %arg3: memref<128x16xf32, #tpu.memory_space<vmem>>, %arg4: memref<128x16xf32, #tpu.memory_space<vmem>>, %arg5: memref<128x16xf32, #tpu.memory_space<vmem>>, %arg6: memref<16x128xf32, #tpu.memory_space<vmem>>, %arg7: memref<3xf32, #tpu.memory_space<smem>>, %arg8: memref<32x128xf32, #tpu.memory_space<vmem>>, %arg9: memref<32x256xf32, #tpu.memory_space<vmem>>, %arg10: memref<32x16xf32, #tpu.memory_space<vmem>>, %arg11: memref<32x128xf32, #tpu.memory_space<vmem>>, %arg12: memref<32x16xf32, #tpu.memory_space<vmem>>, %arg13: memref<32x128xf32, #tpu.memory_space<vmem>>) attributes {dimension_semantics = [], scalar_prefetch = 0 : i64, scratch_operands = 5 : i64, tpu.core_type = #tpu.core_type<tc>} {
    %cst = arith.constant 0.000000e+00 : f32
    %0 = vector.broadcast %cst : f32 to vector<32x256xf32>
    %c0 = arith.constant 0 : index
    %c0_0 = arith.constant 0 : index
    %1 = vector.load %arg9[%c0, %c0_0] : memref<32x256xf32, #tpu.memory_space<vmem>>, vector<32x256xf32>
    tpu.vector_store %arg9[%c0, %c0_0], %0 {strides = array<i32>} : memref<32x256xf32, #tpu.memory_space<vmem>>, vector<32x256xf32>,
    %c0_1 = arith.constant 0 : index
    %c0_2 = arith.constant 0 : index
    %c0_3 = arith.constant 0 : index
    %c0_4 = arith.constant 0 : index
    %2 = vector.load %arg0[%c0_1, %c0_2, %c0_3, %c0_4] : memref<2x4x16x16xf32, #tpu.memory_space<vmem>>, vector<1x1x15x16xf32>
    %3 = vector.shape_cast %2 : vector<1x1x15x16xf32> to vector<15x16xf32>
    %c1 = arith.constant 1 : index
    %c0_5 = arith.constant 0 : index
    %4 = vector.load %arg9[%c1, %c0_5] : memref<32x256xf32, #tpu.memory_space<vmem>>, vector<15x16xf32>
    tpu.vector_store %arg9[%c1, %c0_5], %3 {strides = array<i32>} : memref<32x256xf32, #tpu.memory_space<vmem>>, vector<15x16xf32>,
    %c0_6 = arith.constant 0 : index
    %c0_7 = arith.constant 0 : index
    %c0_8 = arith.constant 0 : index
    %c0_9 = arith.constant 0 : index
    %5 = vector.load %arg0[%c0_6, %c0_7, %c0_8, %c0_9] : memref<2x4x16x16xf32, #tpu.memory_space<vmem>>, vector<1x1x16x16xf32>
    %6 = vector.shape_cast %5 : vector<1x1x16x16xf32> to vector<16x16xf32>
    %c0_10 = arith.constant 0 : index
    %c16 = arith.constant 16 : index
    %7 = vector.load %arg9[%c0_10, %c16] : memref<32x256xf32, #tpu.memory_space<vmem>>, vector<16x16xf32>
    tpu.vector_store %arg9[%c0_10, %c16], %6 {strides = array<i32>} : memref<32x256xf32, #tpu.memory_space<vmem>>, vector<16x16xf32>,
    %c0_11 = arith.constant 0 : index
    %c0_12 = arith.constant 0 : index
    %c1_13 = arith.constant 1 : index
    %c0_14 = arith.constant 0 : index
    %8 = vector.load %arg0[%c0_11, %c0_12, %c1_13, %c0_14] : memref<2x4x16x16xf32, #tpu.memory_space<vmem>>, vector<1x1x15x16xf32>
    %9 = vector.shape_cast %8 : vector<1x1x15x16xf32> to vector<15x16xf32>
    %c0_15 = arith.constant 0 : index
    %c32 = arith.constant 32 : index
    %10 = vector.load %arg9[%c0_15, %c32] : memref<32x256xf32, #tpu.memory_space<vmem>>, vector<15x16xf32>
    tpu.vector_store %arg9[%c0_15, %c32], %9 {strides = array<i32>} : memref<32x256xf32, #tpu.memory_space<vmem>>, vector<15x16xf32>,
    %c0_16 = arith.constant 0 : index
    %c1_17 = arith.constant 1 : index
    %c0_18 = arith.constant 0 : index
    %c0_19 = arith.constant 0 : index
    %11 = vector.load %arg0[%c0_16, %c1_17, %c0_18, %c0_19] : memref<2x4x16x16xf32, #tpu.memory_space<vmem>>, vector<1x1x15x16xf32>
    %12 = vector.shape_cast %11 : vector<1x1x15x16xf32> to vector<15x16xf32>
    %c1_20 = arith.constant 1 : index
    %c48 = arith.constant 48 : index
    %13 = vector.load %arg9[%c1_20, %c48] : memref<32x256xf32, #tpu.memory_space<vmem>>, vector<15x16xf32>
    tpu.vector_store %arg9[%c1_20, %c48], %12 {strides = array<i32>} : memref<32x256xf32, #tpu.memory_space<vmem>>, vector<15x16xf32>,
    %c0_21 = arith.constant 0 : index
    %c1_22 = arith.constant 1 : index
    %c0_23 = arith.constant 0 : index
    %c0_24 = arith.constant 0 : index
    %14 = vector.load %arg0[%c0_21, %c1_22, %c0_23, %c0_24] : memref<2x4x16x16xf32, #tpu.memory_space<vmem>>, vector<1x1x16x16xf32>
    %15 = vector.shape_cast %14 : vector<1x1x16x16xf32> to vector<16x16xf32>
    %c0_25 = arith.constant 0 : index
    %c64 = arith.constant 64 : index
    %16 = vector.load %arg9[%c0_25, %c64] : memref<32x256xf32, #tpu.memory_space<vmem>>, vector<16x16xf32>
    tpu.vector_store %arg9[%c0_25, %c64], %15 {strides = array<i32>} : memref<32x256xf32, #tpu.memory_space<vmem>>, vector<16x16xf32>,
    %c0_26 = arith.constant 0 : index
    %c1_27 = arith.constant 1 : index
    %c1_28 = arith.constant 1 : index
    %c0_29 = arith.constant 0 : index
    %17 = vector.load %arg0[%c0_26, %c1_27, %c1_28, %c0_29] : memref<2x4x16x16xf32, #tpu.memory_space<vmem>>, vector<1x1x15x16xf32>
    %18 = vector.shape_cast %17 : vector<1x1x15x16xf32> to vector<15x16xf32>
    %c0_30 = arith.constant 0 : index
    %c80 = arith.constant 80 : index
    %19 = vector.load %arg9[%c0_30, %c80] : memref<32x256xf32, #tpu.memory_space<vmem>>, vector<15x16xf32>
    tpu.vector_store %arg9[%c0_30, %c80], %18 {strides = array<i32>} : memref<32x256xf32, #tpu.memory_space<vmem>>, vector<15x16xf32>,
    %c0_31 = arith.constant 0 : index
    %c2 = arith.constant 2 : index
    %c0_32 = arith.constant 0 : index
    %c0_33 = arith.constant 0 : index
    %20 = vector.load %arg0[%c0_31, %c2, %c0_32, %c0_33] : memref<2x4x16x16xf32, #tpu.memory_space<vmem>>, vector<1x1x15x16xf32>
    %21 = vector.shape_cast %20 : vector<1x1x15x16xf32> to vector<15x16xf32>
    %c1_34 = arith.constant 1 : index
    %c96 = arith.constant 96 : index
    %22 = vector.load %arg9[%c1_34, %c96] : memref<32x256xf32, #tpu.memory_space<vmem>>, vector<15x16xf32>
    tpu.vector_store %arg9[%c1_34, %c96], %21 {strides = array<i32>} : memref<32x256xf32, #tpu.memory_space<vmem>>, vector<15x16xf32>,
    %c0_35 = arith.constant 0 : index
    %c2_36 = arith.constant 2 : index
    %c0_37 = arith.constant 0 : index
    %c0_38 = arith.constant 0 : index
    %23 = vector.load %arg0[%c0_35, %c2_36, %c0_37, %c0_38] : memref<2x4x16x16xf32, #tpu.memory_space<vmem>>, vector<1x1x16x16xf32>
    %24 = vector.shape_cast %23 : vector<1x1x16x16xf32> to vector<16x16xf32>
    %c0_39 = arith.constant 0 : index
    %c112 = arith.constant 112 : index
    %25 = vector.load %arg9[%c0_39, %c112] : memref<32x256xf32, #tpu.memory_space<vmem>>, vector<16x16xf32>
    tpu.vector_store %arg9[%c0_39, %c112], %24 {strides = array<i32>} : memref<32x256xf32, #tpu.memory_space<vmem>>, vector<16x16xf32>,
    %c0_40 = arith.constant 0 : index
    %c2_41 = arith.constant 2 : index
    %c1_42 = arith.constant 1 : index
    %c0_43 = arith.constant 0 : index
    %26 = vector.load %arg0[%c0_40, %c2_41, %c1_42, %c0_43] : memref<2x4x16x16xf32, #tpu.memory_space<vmem>>, vector<1x1x15x16xf32>
    %27 = vector.shape_cast %26 : vector<1x1x15x16xf32> to vector<15x16xf32>
    %c0_44 = arith.constant 0 : index
    %c128 = arith.constant 128 : index
    %28 = vector.load %arg9[%c0_44, %c128] : memref<32x256xf32, #tpu.memory_space<vmem>>, vector<15x16xf32>
    tpu.vector_store %arg9[%c0_44, %c128], %27 {strides = array<i32>} : memref<32x256xf32, #tpu.memory_space<vmem>>, vector<15x16xf32>,
    %c0_45 = arith.constant 0 : index
    %c3 = arith.constant 3 : index
    %c0_46 = arith.constant 0 : index
    %c0_47 = arith.constant 0 : index
    %29 = vector.load %arg0[%c0_45, %c3, %c0_46, %c0_47] : memref<2x4x16x16xf32, #tpu.memory_space<vmem>>, vector<1x1x15x16xf32>
    %30 = vector.shape_cast %29 : vector<1x1x15x16xf32> to vector<15x16xf32>
    %c1_48 = arith.constant 1 : index
    %c144 = arith.constant 144 : index
    %31 = vector.load %arg9[%c1_48, %c144] : memref<32x256xf32, #tpu.memory_space<vmem>>, vector<15x16xf32>
    tpu.vector_store %arg9[%c1_48, %c144], %30 {strides = array<i32>} : memref<32x256xf32, #tpu.memory_space<vmem>>, vector<15x16xf32>,
    %c0_49 = arith.constant 0 : index
    %c3_50 = arith.constant 3 : index
    %c0_51 = arith.constant 0 : index
    %c0_52 = arith.constant 0 : index
    %32 = vector.load %arg0[%c0_49, %c3_50, %c0_51, %c0_52] : memref<2x4x16x16xf32, #tpu.memory_space<vmem>>, vector<1x1x16x16xf32>
    %33 = vector.shape_cast %32 : vector<1x1x16x16xf32> to vector<16x16xf32>
    %c0_53 = arith.constant 0 : index
    %c160 = arith.constant 160 : index
    %34 = vector.load %arg9[%c0_53, %c160] : memref<32x256xf32, #tpu.memory_space<vmem>>, vector<16x16xf32>
    tpu.vector_store %arg9[%c0_53, %c160], %33 {strides = array<i32>} : memref<32x256xf32, #tpu.memory_space<vmem>>, vector<16x16xf32>,
    %c0_54 = arith.constant 0 : index
    %c3_55 = arith.constant 3 : index
    %c1_56 = arith.constant 1 : index
    %c0_57 = arith.constant 0 : index
    %35 = vector.load %arg0[%c0_54, %c3_55, %c1_56, %c0_57] : memref<2x4x16x16xf32, #tpu.memory_space<vmem>>, vector<1x1x15x16xf32>
    %36 = vector.shape_cast %35 : vector<1x1x15x16xf32> to vector<15x16xf32>
    %c0_58 = arith.constant 0 : index
    %c176 = arith.constant 176 : index
    %37 = vector.load %arg9[%c0_58, %c176] : memref<32x256xf32, #tpu.memory_space<vmem>>, vector<15x16xf32>
    tpu.vector_store %arg9[%c0_58, %c176], %36 {strides = array<i32>} : memref<32x256xf32, #tpu.memory_space<vmem>>, vector<15x16xf32>,
    %c1_59 = arith.constant 1 : index
    %c0_60 = arith.constant 0 : index
    %c0_61 = arith.constant 0 : index
    %c0_62 = arith.constant 0 : index
    %38 = vector.load %arg0[%c1_59, %c0_60, %c0_61, %c0_62] : memref<2x4x16x16xf32, #tpu.memory_space<vmem>>, vector<1x1x15x16xf32>
    %39 = vector.shape_cast %38 : vector<1x1x15x16xf32> to vector<15x16xf32>
    %c17 = arith.constant 17 : index
    %c0_63 = arith.constant 0 : index
    %40 = vector.load %arg9[%c17, %c0_63] : memref<32x256xf32, #tpu.memory_space<vmem>>, vector<15x16xf32>
    tpu.vector_store %arg9[%c17, %c0_63], %39 {strides = array<i32>} : memref<32x256xf32, #tpu.memory_space<vmem>>, vector<15x16xf32>,
    %c1_64 = arith.constant 1 : index
    %c0_65 = arith.constant 0 : index
    %c0_66 = arith.constant 0 : index
    %c0_67 = arith.constant 0 : index
    %41 = vector.load %arg0[%c1_64, %c0_65, %c0_66, %c0_67] : memref<2x4x16x16xf32, #tpu.memory_space<vmem>>, vector<1x1x16x16xf32>
    %42 = vector.shape_cast %41 : vector<1x1x16x16xf32> to vector<16x16xf32>
    %c16_68 = arith.constant 16 : index
    %c16_69 = arith.constant 16 : index
    %43 = vector.load %arg9[%c16_68, %c16_69] : memref<32x256xf32, #tpu.memory_space<vmem>>, vector<16x16xf32>
    tpu.vector_store %arg9[%c16_68, %c16_69], %42 {strides = array<i32>} : memref<32x256xf32, #tpu.memory_space<vmem>>, vector<16x16xf32>,
    %c1_70 = arith.constant 1 : index
    %c0_71 = arith.constant 0 : index
    %c1_72 = arith.constant 1 : index
    %c0_73 = arith.constant 0 : index
    %44 = vector.load %arg0[%c1_70, %c0_71, %c1_72, %c0_73] : memref<2x4x16x16xf32, #tpu.memory_space<vmem>>, vector<1x1x15x16xf32>
    %45 = vector.shape_cast %44 : vector<1x1x15x16xf32> to vector<15x16xf32>
    %c16_74 = arith.constant 16 : index
    %c32_75 = arith.constant 32 : index
    %46 = vector.load %arg9[%c16_74, %c32_75] : memref<32x256xf32, #tpu.memory_space<vmem>>, vector<15x16xf32>
    tpu.vector_store %arg9[%c16_74, %c32_75], %45 {strides = array<i32>} : memref<32x256xf32, #tpu.memory_space<vmem>>, vector<15x16xf32>,
    %c1_76 = arith.constant 1 : index
    %c1_77 = arith.constant 1 : index
    %c0_78 = arith.constant 0 : index
    %c0_79 = arith.constant 0 : index
    %47 = vector.load %arg0[%c1_76, %c1_77, %c0_78, %c0_79] : memref<2x4x16x16xf32, #tpu.memory_space<vmem>>, vector<1x1x15x16xf32>
    %48 = vector.shape_cast %47 : vector<1x1x15x16xf32> to vector<15x16xf32>
    %c17_80 = arith.constant 17 : index
    %c48_81 = arith.constant 48 : index
    %49 = vector.load %arg9[%c17_80, %c48_81] : memref<32x256xf32, #tpu.memory_space<vmem>>, vector<15x16xf32>
    tpu.vector_store %arg9[%c17_80, %c48_81], %48 {strides = array<i32>} : memref<32x256xf32, #tpu.memory_space<vmem>>, vector<15x16xf32>,
    %c1_82 = arith.constant 1 : index
    %c1_83 = arith.constant 1 : index
    %c0_84 = arith.constant 0 : index
    %c0_85 = arith.constant 0 : index
    %50 = vector.load %arg0[%c1_82, %c1_83, %c0_84, %c0_85] : memref<2x4x16x16xf32, #tpu.memory_space<vmem>>, vector<1x1x16x16xf32>
    %51 = vector.shape_cast %50 : vector<1x1x16x16xf32> to vector<16x16xf32>
    %c16_86 = arith.constant 16 : index
    %c64_87 = arith.constant 64 : index
    %52 = vector.load %arg9[%c16_86, %c64_87] : memref<32x256xf32, #tpu.memory_space<vmem>>, vector<16x16xf32>
    tpu.vector_store %arg9[%c16_86, %c64_87], %51 {strides = array<i32>} : memref<32x256xf32, #tpu.memory_space<vmem>>, vector<16x16xf32>,
    %c1_88 = arith.constant 1 : index
    %c1_89 = arith.constant 1 : index
    %c1_90 = arith.constant 1 : index
    %c0_91 = arith.constant 0 : index
    %53 = vector.load %arg0[%c1_88, %c1_89, %c1_90, %c0_91] : memref<2x4x16x16xf32, #tpu.memory_space<vmem>>, vector<1x1x15x16xf32>
    %54 = vector.shape_cast %53 : vector<1x1x15x16xf32> to vector<15x16xf32>
    %c16_92 = arith.constant 16 : index
    %c80_93 = arith.constant 80 : index
    %55 = vector.load %arg9[%c16_92, %c80_93] : memref<32x256xf32, #tpu.memory_space<vmem>>, vector<15x16xf32>
    tpu.vector_store %arg9[%c16_92, %c80_93], %54 {strides = array<i32>} : memref<32x256xf32, #tpu.memory_space<vmem>>, vector<15x16xf32>,
    %c1_94 = arith.constant 1 : index
    %c2_95 = arith.constant 2 : index
    %c0_96 = arith.constant 0 : index
    %c0_97 = arith.constant 0 : index
    %56 = vector.load %arg0[%c1_94, %c2_95, %c0_96, %c0_97] : memref<2x4x16x16xf32, #tpu.memory_space<vmem>>, vector<1x1x15x16xf32>
    %57 = vector.shape_cast %56 : vector<1x1x15x16xf32> to vector<15x16xf32>
    %c17_98 = arith.constant 17 : index
    %c96_99 = arith.constant 96 : index
    %58 = vector.load %arg9[%c17_98, %c96_99] : memref<32x256xf32, #tpu.memory_space<vmem>>, vector<15x16xf32>
    tpu.vector_store %arg9[%c17_98, %c96_99], %57 {strides = array<i32>} : memref<32x256xf32, #tpu.memory_space<vmem>>, vector<15x16xf32>,
    %c1_100 = arith.constant 1 : index
    %c2_101 = arith.constant 2 : index
    %c0_102 = arith.constant 0 : index
    %c0_103 = arith.constant 0 : index
    %59 = vector.load %arg0[%c1_100, %c2_101, %c0_102, %c0_103] : memref<2x4x16x16xf32, #tpu.memory_space<vmem>>, vector<1x1x16x16xf32>
    %60 = vector.shape_cast %59 : vector<1x1x16x16xf32> to vector<16x16xf32>
    %c16_104 = arith.constant 16 : index
    %c112_105 = arith.constant 112 : index
    %61 = vector.load %arg9[%c16_104, %c112_105] : memref<32x256xf32, #tpu.memory_space<vmem>>, vector<16x16xf32>
    tpu.vector_store %arg9[%c16_104, %c112_105], %60 {strides = array<i32>} : memref<32x256xf32, #tpu.memory_space<vmem>>, vector<16x16xf32>,
    %c1_106 = arith.constant 1 : index
    %c2_107 = arith.constant 2 : index
    %c1_108 = arith.constant 1 : index
    %c0_109 = arith.constant 0 : index
    %62 = vector.load %arg0[%c1_106, %c2_107, %c1_108, %c0_109] : memref<2x4x16x16xf32, #tpu.memory_space<vmem>>, vector<1x1x15x16xf32>
    %63 = vector.shape_cast %62 : vector<1x1x15x16xf32> to vector<15x16xf32>
    %c16_110 = arith.constant 16 : index
    %c128_111 = arith.constant 128 : index
    %64 = vector.load %arg9[%c16_110, %c128_111] : memref<32x256xf32, #tpu.memory_space<vmem>>, vector<15x16xf32>
    tpu.vector_store %arg9[%c16_110, %c128_111], %63 {strides = array<i32>} : memref<32x256xf32, #tpu.memory_space<vmem>>, vector<15x16xf32>,
    %c1_112 = arith.constant 1 : index
    %c3_113 = arith.constant 3 : index
    %c0_114 = arith.constant 0 : index
    %c0_115 = arith.constant 0 : index
    %65 = vector.load %arg0[%c1_112, %c3_113, %c0_114, %c0_115] : memref<2x4x16x16xf32, #tpu.memory_space<vmem>>, vector<1x1x15x16xf32>
    %66 = vector.shape_cast %65 : vector<1x1x15x16xf32> to vector<15x16xf32>
    %c17_116 = arith.constant 17 : index
    %c144_117 = arith.constant 144 : index
    %67 = vector.load %arg9[%c17_116, %c144_117] : memref<32x256xf32, #tpu.memory_space<vmem>>, vector<15x16xf32>
    tpu.vector_store %arg9[%c17_116, %c144_117], %66 {strides = array<i32>} : memref<32x256xf32, #tpu.memory_space<vmem>>, vector<15x16xf32>,
    %c1_118 = arith.constant 1 : index
    %c3_119 = arith.constant 3 : index
    %c0_120 = arith.constant 0 : index
    %c0_121 = arith.constant 0 : index
    %68 = vector.load %arg0[%c1_118, %c3_119, %c0_120, %c0_121] : memref<2x4x16x16xf32, #tpu.memory_space<vmem>>, vector<1x1x16x16xf32>
    %69 = vector.shape_cast %68 : vector<1x1x16x16xf32> to vector<16x16xf32>
    %c16_122 = arith.constant 16 : index
    %c160_123 = arith.constant 160 : index
    %70 = vector.load %arg9[%c16_122, %c160_123] : memref<32x256xf32, #tpu.memory_space<vmem>>, vector<16x16xf32>
    tpu.vector_store %arg9[%c16_122, %c160_123], %69 {strides = array<i32>} : memref<32x256xf32, #tpu.memory_space<vmem>>, vector<16x16xf32>,
    %c1_124 = arith.constant 1 : index
    %c3_125 = arith.constant 3 : index
    %c1_126 = arith.constant 1 : index
    %c0_127 = arith.constant 0 : index
    %71 = vector.load %arg0[%c1_124, %c3_125, %c1_126, %c0_127] : memref<2x4x16x16xf32, #tpu.memory_space<vmem>>, vector<1x1x15x16xf32>
    %72 = vector.shape_cast %71 : vector<1x1x15x16xf32> to vector<15x16xf32>
    %c16_128 = arith.constant 16 : index
    %c176_129 = arith.constant 176 : index
    %73 = vector.load %arg9[%c16_128, %c176_129] : memref<32x256xf32, #tpu.memory_space<vmem>>, vector<15x16xf32>
    tpu.vector_store %arg9[%c16_128, %c176_129], %72 {strides = array<i32>} : memref<32x256xf32, #tpu.memory_space<vmem>>, vector<15x16xf32>,
    %c0_130 = arith.constant 0 : index
    %c0_131 = arith.constant 0 : index
    %74 = vector.load %arg9[%c0_130, %c0_131] : memref<32x256xf32, #tpu.memory_space<vmem>>, vector<32x256xf32>
    %c0_132 = arith.constant 0 : index
    %c0_133 = arith.constant 0 : index
    %75 = vector.load %arg1[%c0_132, %c0_133] : memref<256x128xf32, #tpu.memory_space<vmem>>, vector<256x128xf32>
    %cst_134 = arith.constant dense<0.000000e+00> : vector<32x128xf32>
    %76 = tpu.matmul %74, %75, %cst_134 {dimension_numbers = #tpu.dot_dimension_numbers<[1], [0], [0], [1], [0, 0, 1, 1], [], []>} : vector<32x256xf32>, vector<256x128xf32>, vector<32x128xf32> -> vector<32x128xf32>
    %c0_135 = arith.constant 0 : index
    %c0_136 = arith.constant 0 : index
    %77 = vector.load %arg2[%c0_135, %c0_136] : memref<1x128xf32, #tpu.memory_space<vmem>>, vector<1x128xf32>
    %78 = vector.broadcast %77 : vector<1x128xf32> to vector<32x128xf32>
    %79 = arith.addf %76, %78 : vector<32x128xf32>
    %c0_137 = arith.constant 0 : index
    %c0_138 = arith.constant 0 : index
    %80 = vector.load %arg3[%c0_137, %c0_138] : memref<128x16xf32, #tpu.memory_space<vmem>>, vector<128x16xf32>
    %cst_139 = arith.constant dense<0.000000e+00> : vector<32x16xf32>
    %81 = tpu.matmul %79, %80, %cst_139 {dimension_numbers = #tpu.dot_dimension_numbers<[1], [0], [0], [1], [0, 0, 1, 1], [], []>} : vector<32x128xf32>, vector<128x16xf32>, vector<32x16xf32> -> vector<32x16xf32>
    %c0_140 = arith.constant 0 : index
    %c0_141 = arith.constant 0 : index
    %82 = vector.load %arg10[%c0_140, %c0_141] : memref<32x16xf32, #tpu.memory_space<vmem>>, vector<32x16xf32>
    tpu.vector_store %arg10[%c0_140, %c0_141], %81 {strides = array<i32>} : memref<32x16xf32, #tpu.memory_space<vmem>>, vector<32x16xf32>,
    %cst_142 = arith.constant 0.000000e+00 : f32
    %83 = vector.broadcast %cst_142 : f32 to vector<32x128xf32>
    %c0_143 = arith.constant 0 : index
    %c0_144 = arith.constant 0 : index
    %84 = vector.load %arg11[%c0_143, %c0_144] : memref<32x128xf32, #tpu.memory_space<vmem>>, vector<32x128xf32>
    tpu.vector_store %arg11[%c0_143, %c0_144], %83 {strides = array<i32>} : memref<32x128xf32, #tpu.memory_space<vmem>>, vector<32x128xf32>,
    %c0_145 = arith.constant 0 : index
    %c0_146 = arith.constant 0 : index
    %85 = vector.load %arg10[%c0_145, %c0_146] : memref<32x16xf32, #tpu.memory_space<vmem>>, vector<13x16xf32>
    %c3_147 = arith.constant 3 : index
    %c0_148 = arith.constant 0 : index
    %86 = vector.load %arg11[%c3_147, %c0_148] : memref<32x128xf32, #tpu.memory_space<vmem>>, vector<13x16xf32>
    tpu.vector_store %arg11[%c3_147, %c0_148], %85 {strides = array<i32>} : memref<32x128xf32, #tpu.memory_space<vmem>>, vector<13x16xf32>,
    %c0_149 = arith.constant 0 : index
    %c0_150 = arith.constant 0 : index
    %87 = vector.load %arg10[%c0_149, %c0_150] : memref<32x16xf32, #tpu.memory_space<vmem>>, vector<14x16xf32>
    %c2_151 = arith.constant 2 : index
    %c16_152 = arith.constant 16 : index
    %88 = vector.load %arg11[%c2_151, %c16_152] : memref<32x128xf32, #tpu.memory_space<vmem>>, vector<14x16xf32>
    tpu.vector_store %arg11[%c2_151, %c16_152], %87 {strides = array<i32>} : memref<32x128xf32, #tpu.memory_space<vmem>>, vector<14x16xf32>,
    %c0_153 = arith.constant 0 : index
    %c0_154 = arith.constant 0 : index
    %89 = vector.load %arg10[%c0_153, %c0_154] : memref<32x16xf32, #tpu.memory_space<vmem>>, vector<15x16xf32>
    %c1_155 = arith.constant 1 : index
    %c32_156 = arith.constant 32 : index
    %90 = vector.load %arg11[%c1_155, %c32_156] : memref<32x128xf32, #tpu.memory_space<vmem>>, vector<15x16xf32>
    tpu.vector_store %arg11[%c1_155, %c32_156], %89 {strides = array<i32>} : memref<32x128xf32, #tpu.memory_space<vmem>>, vector<15x16xf32>,
    %c0_157 = arith.constant 0 : index
    %c0_158 = arith.constant 0 : index
    %91 = vector.load %arg10[%c0_157, %c0_158] : memref<32x16xf32, #tpu.memory_space<vmem>>, vector<16x16xf32>
    %c0_159 = arith.constant 0 : index
    %c48_160 = arith.constant 48 : index
    %92 = vector.load %arg11[%c0_159, %c48_160] : memref<32x128xf32, #tpu.memory_space<vmem>>, vector<16x16xf32>
    tpu.vector_store %arg11[%c0_159, %c48_160], %91 {strides = array<i32>} : memref<32x128xf32, #tpu.memory_space<vmem>>, vector<16x16xf32>,
    %c1_161 = arith.constant 1 : index
    %c0_162 = arith.constant 0 : index
    %93 = vector.load %arg10[%c1_161, %c0_162] : memref<32x16xf32, #tpu.memory_space<vmem>>, vector<15x16xf32>
    %c0_163 = arith.constant 0 : index
    %c64_164 = arith.constant 64 : index
    %94 = vector.load %arg11[%c0_163, %c64_164] : memref<32x128xf32, #tpu.memory_space<vmem>>, vector<15x16xf32>
    tpu.vector_store %arg11[%c0_163, %c64_164], %93 {strides = array<i32>} : memref<32x128xf32, #tpu.memory_space<vmem>>, vector<15x16xf32>,
    %c2_165 = arith.constant 2 : index
    %c0_166 = arith.constant 0 : index
    %95 = vector.load %arg10[%c2_165, %c0_166] : memref<32x16xf32, #tpu.memory_space<vmem>>, vector<14x16xf32>
    %c0_167 = arith.constant 0 : index
    %c80_168 = arith.constant 80 : index
    %96 = vector.load %arg11[%c0_167, %c80_168] : memref<32x128xf32, #tpu.memory_space<vmem>>, vector<14x16xf32>
    tpu.vector_store %arg11[%c0_167, %c80_168], %95 {strides = array<i32>} : memref<32x128xf32, #tpu.memory_space<vmem>>, vector<14x16xf32>,
    %c3_169 = arith.constant 3 : index
    %c0_170 = arith.constant 0 : index
    %97 = vector.load %arg10[%c3_169, %c0_170] : memref<32x16xf32, #tpu.memory_space<vmem>>, vector<13x16xf32>
    %c0_171 = arith.constant 0 : index
    %c96_172 = arith.constant 96 : index
    %98 = vector.load %arg11[%c0_171, %c96_172] : memref<32x128xf32, #tpu.memory_space<vmem>>, vector<13x16xf32>
    tpu.vector_store %arg11[%c0_171, %c96_172], %97 {strides = array<i32>} : memref<32x128xf32, #tpu.memory_space<vmem>>, vector<13x16xf32>,
    %c16_173 = arith.constant 16 : index
    %c0_174 = arith.constant 0 : index
    %99 = vector.load %arg10[%c16_173, %c0_174] : memref<32x16xf32, #tpu.memory_space<vmem>>, vector<13x16xf32>
    %c19 = arith.constant 19 : index
    %c0_175 = arith.constant 0 : index
    %100 = vector.load %arg11[%c19, %c0_175] : memref<32x128xf32, #tpu.memory_space<vmem>>, vector<13x16xf32>
    tpu.vector_store %arg11[%c19, %c0_175], %99 {strides = array<i32>} : memref<32x128xf32, #tpu.memory_space<vmem>>, vector<13x16xf32>,
    %c16_176 = arith.constant 16 : index
    %c0_177 = arith.constant 0 : index
    %101 = vector.load %arg10[%c16_176, %c0_177] : memref<32x16xf32, #tpu.memory_space<vmem>>, vector<14x16xf32>
    %c18 = arith.constant 18 : index
    %c16_178 = arith.constant 16 : index
    %102 = vector.load %arg11[%c18, %c16_178] : memref<32x128xf32, #tpu.memory_space<vmem>>, vector<14x16xf32>
    tpu.vector_store %arg11[%c18, %c16_178], %101 {strides = array<i32>} : memref<32x128xf32, #tpu.memory_space<vmem>>, vector<14x16xf32>,
    %c16_179 = arith.constant 16 : index
    %c0_180 = arith.constant 0 : index
    %103 = vector.load %arg10[%c16_179, %c0_180] : memref<32x16xf32, #tpu.memory_space<vmem>>, vector<15x16xf32>
    %c17_181 = arith.constant 17 : index
    %c32_182 = arith.constant 32 : index
    %104 = vector.load %arg11[%c17_181, %c32_182] : memref<32x128xf32, #tpu.memory_space<vmem>>, vector<15x16xf32>
    tpu.vector_store %arg11[%c17_181, %c32_182], %103 {strides = array<i32>} : memref<32x128xf32, #tpu.memory_space<vmem>>, vector<15x16xf32>,
    %c16_183 = arith.constant 16 : index
    %c0_184 = arith.constant 0 : index
    %105 = vector.load %arg10[%c16_183, %c0_184] : memref<32x16xf32, #tpu.memory_space<vmem>>, vector<16x16xf32>
    %c16_185 = arith.constant 16 : index
    %c48_186 = arith.constant 48 : index
    %106 = vector.load %arg11[%c16_185, %c48_186] : memref<32x128xf32, #tpu.memory_space<vmem>>, vector<16x16xf32>
    tpu.vector_store %arg11[%c16_185, %c48_186], %105 {strides = array<i32>} : memref<32x128xf32, #tpu.memory_space<vmem>>, vector<16x16xf32>,
    %c17_187 = arith.constant 17 : index
    %c0_188 = arith.constant 0 : index
    %107 = vector.load %arg10[%c17_187, %c0_188] : memref<32x16xf32, #tpu.memory_space<vmem>>, vector<15x16xf32>
    %c16_189 = arith.constant 16 : index
    %c64_190 = arith.constant 64 : index
    %108 = vector.load %arg11[%c16_189, %c64_190] : memref<32x128xf32, #tpu.memory_space<vmem>>, vector<15x16xf32>
    tpu.vector_store %arg11[%c16_189, %c64_190], %107 {strides = array<i32>} : memref<32x128xf32, #tpu.memory_space<vmem>>, vector<15x16xf32>,
    %c18_191 = arith.constant 18 : index
    %c0_192 = arith.constant 0 : index
    %109 = vector.load %arg10[%c18_191, %c0_192] : memref<32x16xf32, #tpu.memory_space<vmem>>, vector<14x16xf32>
    %c16_193 = arith.constant 16 : index
    %c80_194 = arith.constant 80 : index
    %110 = vector.load %arg11[%c16_193, %c80_194] : memref<32x128xf32, #tpu.memory_space<vmem>>, vector<14x16xf32>
    tpu.vector_store %arg11[%c16_193, %c80_194], %109 {strides = array<i32>} : memref<32x128xf32, #tpu.memory_space<vmem>>, vector<14x16xf32>,
    %c19_195 = arith.constant 19 : index
    %c0_196 = arith.constant 0 : index
    %111 = vector.load %arg10[%c19_195, %c0_196] : memref<32x16xf32, #tpu.memory_space<vmem>>, vector<13x16xf32>
    %c16_197 = arith.constant 16 : index
    %c96_198 = arith.constant 96 : index
    %112 = vector.load %arg11[%c16_197, %c96_198] : memref<32x128xf32, #tpu.memory_space<vmem>>, vector<13x16xf32>
    tpu.vector_store %arg11[%c16_197, %c96_198], %111 {strides = array<i32>} : memref<32x128xf32, #tpu.memory_space<vmem>>, vector<13x16xf32>,
    %c0_199 = arith.constant 0 : index
    %c0_200 = arith.constant 0 : index
    %113 = vector.load %arg11[%c0_199, %c0_200] : memref<32x128xf32, #tpu.memory_space<vmem>>, vector<32x128xf32>
    %c0_201 = arith.constant 0 : index
    %c0_202 = arith.constant 0 : index
    %114 = vector.load %arg4[%c0_201, %c0_202] : memref<128x16xf32, #tpu.memory_space<vmem>>, vector<128x16xf32>
    %cst_203 = arith.constant dense<0.000000e+00> : vector<32x16xf32>
    %115 = tpu.matmul %113, %114, %cst_203 {dimension_numbers = #tpu.dot_dimension_numbers<[1], [0], [0], [1], [0, 0, 1, 1], [], []>} : vector<32x128xf32>, vector<128x16xf32>, vector<32x16xf32> -> vector<32x16xf32>
    %c0_204 = arith.constant 0 : index
    %116 = memref.load %arg7[%c0_204] : memref<3xf32, #tpu.memory_space<smem>>
    %117 = vector.broadcast %116 : f32 to vector<32x16xf32>
    %118 = arith.addf %115, %117 : vector<32x16xf32>
    %cst_205 = arith.constant 0.000000e+00 : f32
    %119 = vector.broadcast %cst_205 : f32 to vector<32x16xf32>
    %120 = arith.cmpf oge, %118, %119 : vector<32x16xf32>
    %c1_206 = arith.constant 1 : index
    %121 = memref.load %arg7[%c1_206] : memref<3xf32, #tpu.memory_space<smem>>
    %122 = vector.broadcast %121 : f32 to vector<32x16xf32>
    %123 = arith.mulf %122, %118 : vector<32x16xf32>
    %124 = arith.select %120, %118, %123 : vector<32x16xi1>, vector<32x16xf32>
    %c0_207 = arith.constant 0 : index
    %c0_208 = arith.constant 0 : index
    %125 = vector.load %arg12[%c0_207, %c0_208] : memref<32x16xf32, #tpu.memory_space<vmem>>, vector<32x16xf32>
    tpu.vector_store %arg12[%c0_207, %c0_208], %124 {strides = array<i32>} : memref<32x16xf32, #tpu.memory_space<vmem>>, vector<32x16xf32>,
    %cst_209 = arith.constant 0.000000e+00 : f32
    %126 = vector.broadcast %cst_209 : f32 to vector<32x128xf32>
    %c0_210 = arith.constant 0 : index
    %c0_211 = arith.constant 0 : index
    %127 = vector.load %arg13[%c0_210, %c0_211] : memref<32x128xf32, #tpu.memory_space<vmem>>, vector<32x128xf32>
    tpu.vector_store %arg13[%c0_210, %c0_211], %126 {strides = array<i32>} : memref<32x128xf32, #tpu.memory_space<vmem>>, vector<32x128xf32>,
    %c0_212 = arith.constant 0 : index
    %c0_213 = arith.constant 0 : index
    %128 = vector.load %arg12[%c0_212, %c0_213] : memref<32x16xf32, #tpu.memory_space<vmem>>, vector<10x16xf32>
    %c6 = arith.constant 6 : index
    %c0_214 = arith.constant 0 : index
    %129 = vector.load %arg13[%c6, %c0_214] : memref<32x128xf32, #tpu.memory_space<vmem>>, vector<10x16xf32>
    tpu.vector_store %arg13[%c6, %c0_214], %128 {strides = array<i32>} : memref<32x128xf32, #tpu.memory_space<vmem>>, vector<10x16xf32>,
    %c0_215 = arith.constant 0 : index
    %c0_216 = arith.constant 0 : index
    %130 = vector.load %arg12[%c0_215, %c0_216] : memref<32x16xf32, #tpu.memory_space<vmem>>, vector<12x16xf32>
    %c4 = arith.constant 4 : index
    %c16_217 = arith.constant 16 : index
    %131 = vector.load %arg13[%c4, %c16_217] : memref<32x128xf32, #tpu.memory_space<vmem>>, vector<12x16xf32>
    tpu.vector_store %arg13[%c4, %c16_217], %130 {strides = array<i32>} : memref<32x128xf32, #tpu.memory_space<vmem>>, vector<12x16xf32>,
    %c0_218 = arith.constant 0 : index
    %c0_219 = arith.constant 0 : index
    %132 = vector.load %arg12[%c0_218, %c0_219] : memref<32x16xf32, #tpu.memory_space<vmem>>, vector<14x16xf32>
    %c2_220 = arith.constant 2 : index
    %c32_221 = arith.constant 32 : index
    %133 = vector.load %arg13[%c2_220, %c32_221] : memref<32x128xf32, #tpu.memory_space<vmem>>, vector<14x16xf32>
    tpu.vector_store %arg13[%c2_220, %c32_221], %132 {strides = array<i32>} : memref<32x128xf32, #tpu.memory_space<vmem>>, vector<14x16xf32>,
    %c0_222 = arith.constant 0 : index
    %c0_223 = arith.constant 0 : index
    %134 = vector.load %arg12[%c0_222, %c0_223] : memref<32x16xf32, #tpu.memory_space<vmem>>, vector<16x16xf32>
    %c0_224 = arith.constant 0 : index
    %c48_225 = arith.constant 48 : index
    %135 = vector.load %arg13[%c0_224, %c48_225] : memref<32x128xf32, #tpu.memory_space<vmem>>, vector<16x16xf32>
    tpu.vector_store %arg13[%c0_224, %c48_225], %134 {strides = array<i32>} : memref<32x128xf32, #tpu.memory_space<vmem>>, vector<16x16xf32>,
    %c2_226 = arith.constant 2 : index
    %c0_227 = arith.constant 0 : index
    %136 = vector.load %arg12[%c2_226, %c0_227] : memref<32x16xf32, #tpu.memory_space<vmem>>, vector<14x16xf32>
    %c0_228 = arith.constant 0 : index
    %c64_229 = arith.constant 64 : index
    %137 = vector.load %arg13[%c0_228, %c64_229] : memref<32x128xf32, #tpu.memory_space<vmem>>, vector<14x16xf32>
    tpu.vector_store %arg13[%c0_228, %c64_229], %136 {strides = array<i32>} : memref<32x128xf32, #tpu.memory_space<vmem>>, vector<14x16xf32>,
    %c4_230 = arith.constant 4 : index
    %c0_231 = arith.constant 0 : index
    %138 = vector.load %arg12[%c4_230, %c0_231] : memref<32x16xf32, #tpu.memory_space<vmem>>, vector<12x16xf32>
    %c0_232 = arith.constant 0 : index
    %c80_233 = arith.constant 80 : index
    %139 = vector.load %arg13[%c0_232, %c80_233] : memref<32x128xf32, #tpu.memory_space<vmem>>, vector<12x16xf32>
    tpu.vector_store %arg13[%c0_232, %c80_233], %138 {strides = array<i32>} : memref<32x128xf32, #tpu.memory_space<vmem>>, vector<12x16xf32>,
    %c6_234 = arith.constant 6 : index
    %c0_235 = arith.constant 0 : index
    %140 = vector.load %arg12[%c6_234, %c0_235] : memref<32x16xf32, #tpu.memory_space<vmem>>, vector<10x16xf32>
    %c0_236 = arith.constant 0 : index
    %c96_237 = arith.constant 96 : index
    %141 = vector.load %arg13[%c0_236, %c96_237] : memref<32x128xf32, #tpu.memory_space<vmem>>, vector<10x16xf32>
    tpu.vector_store %arg13[%c0_236, %c96_237], %140 {strides = array<i32>} : memref<32x128xf32, #tpu.memory_space<vmem>>, vector<10x16xf32>,
    %c16_238 = arith.constant 16 : index
    %c0_239 = arith.constant 0 : index
    %142 = vector.load %arg12[%c16_238, %c0_239] : memref<32x16xf32, #tpu.memory_space<vmem>>, vector<10x16xf32>
    %c22 = arith.constant 22 : index
    %c0_240 = arith.constant 0 : index
    %143 = vector.load %arg13[%c22, %c0_240] : memref<32x128xf32, #tpu.memory_space<vmem>>, vector<10x16xf32>
    tpu.vector_store %arg13[%c22, %c0_240], %142 {strides = array<i32>} : memref<32x128xf32, #tpu.memory_space<vmem>>, vector<10x16xf32>,
    %c16_241 = arith.constant 16 : index
    %c0_242 = arith.constant 0 : index
    %144 = vector.load %arg12[%c16_241, %c0_242] : memref<32x16xf32, #tpu.memory_space<vmem>>, vector<12x16xf32>
    %c20 = arith.constant 20 : index
    %c16_243 = arith.constant 16 : index
    %145 = vector.load %arg13[%c20, %c16_243] : memref<32x128xf32, #tpu.memory_space<vmem>>, vector<12x16xf32>
    tpu.vector_store %arg13[%c20, %c16_243], %144 {strides = array<i32>} : memref<32x128xf32, #tpu.memory_space<vmem>>, vector<12x16xf32>,
    %c16_244 = arith.constant 16 : index
    %c0_245 = arith.constant 0 : index
    %146 = vector.load %arg12[%c16_244, %c0_245] : memref<32x16xf32, #tpu.memory_space<vmem>>, vector<14x16xf32>
    %c18_246 = arith.constant 18 : index
    %c32_247 = arith.constant 32 : index
    %147 = vector.load %arg13[%c18_246, %c32_247] : memref<32x128xf32, #tpu.memory_space<vmem>>, vector<14x16xf32>
    tpu.vector_store %arg13[%c18_246, %c32_247], %146 {strides = array<i32>} : memref<32x128xf32, #tpu.memory_space<vmem>>, vector<14x16xf32>,
    %c16_248 = arith.constant 16 : index
    %c0_249 = arith.constant 0 : index
    %148 = vector.load %arg12[%c16_248, %c0_249] : memref<32x16xf32, #tpu.memory_space<vmem>>, vector<16x16xf32>
    %c16_250 = arith.constant 16 : index
    %c48_251 = arith.constant 48 : index
    %149 = vector.load %arg13[%c16_250, %c48_251] : memref<32x128xf32, #tpu.memory_space<vmem>>, vector<16x16xf32>
    tpu.vector_store %arg13[%c16_250, %c48_251], %148 {strides = array<i32>} : memref<32x128xf32, #tpu.memory_space<vmem>>, vector<16x16xf32>,
    %c18_252 = arith.constant 18 : index
    %c0_253 = arith.constant 0 : index
    %150 = vector.load %arg12[%c18_252, %c0_253] : memref<32x16xf32, #tpu.memory_space<vmem>>, vector<14x16xf32>
    %c16_254 = arith.constant 16 : index
    %c64_255 = arith.constant 64 : index
    %151 = vector.load %arg13[%c16_254, %c64_255] : memref<32x128xf32, #tpu.memory_space<vmem>>, vector<14x16xf32>
    tpu.vector_store %arg13[%c16_254, %c64_255], %150 {strides = array<i32>} : memref<32x128xf32, #tpu.memory_space<vmem>>, vector<14x16xf32>,
    %c20_256 = arith.constant 20 : index
    %c0_257 = arith.constant 0 : index
    %152 = vector.load %arg12[%c20_256, %c0_257] : memref<32x16xf32, #tpu.memory_space<vmem>>, vector<12x16xf32>
    %c16_258 = arith.constant 16 : index
    %c80_259 = arith.constant 80 : index
    %153 = vector.load %arg13[%c16_258, %c80_259] : memref<32x128xf32, #tpu.memory_space<vmem>>, vector<12x16xf32>
    tpu.vector_store %arg13[%c16_258, %c80_259], %152 {strides = array<i32>} : memref<32x128xf32, #tpu.memory_space<vmem>>, vector<12x16xf32>,
    %c22_260 = arith.constant 22 : index
    %c0_261 = arith.constant 0 : index
    %154 = vector.load %arg12[%c22_260, %c0_261] : memref<32x16xf32, #tpu.memory_space<vmem>>, vector<10x16xf32>
    %c16_262 = arith.constant 16 : index
    %c96_263 = arith.constant 96 : index
    %155 = vector.load %arg13[%c16_262, %c96_263] : memref<32x128xf32, #tpu.memory_space<vmem>>, vector<10x16xf32>
    tpu.vector_store %arg13[%c16_262, %c96_263], %154 {strides = array<i32>} : memref<32x128xf32, #tpu.memory_space<vmem>>, vector<10x16xf32>,
    %c0_264 = arith.constant 0 : index
    %c0_265 = arith.constant 0 : index
    %156 = vector.load %arg13[%c0_264, %c0_265] : memref<32x128xf32, #tpu.memory_space<vmem>>, vector<32x128xf32>
    %c0_266 = arith.constant 0 : index
    %c0_267 = arith.constant 0 : index
    %157 = vector.load %arg5[%c0_266, %c0_267] : memref<128x16xf32, #tpu.memory_space<vmem>>, vector<128x16xf32>
    %cst_268 = arith.constant dense<0.000000e+00> : vector<32x16xf32>
    %158 = tpu.matmul %156, %157, %cst_268 {dimension_numbers = #tpu.dot_dimension_numbers<[1], [0], [0], [1], [0, 0, 1, 1], [], []>} : vector<32x128xf32>, vector<128x16xf32>, vector<32x16xf32> -> vector<32x16xf32>
    %c2_269 = arith.constant 2 : index
    %159 = memref.load %arg7[%c2_269] : memref<3xf32, #tpu.memory_space<smem>>
    %160 = vector.broadcast %159 : f32 to vector<32x16xf32>
    %161 = arith.addf %158, %160 : vector<32x16xf32>
    %162 = arith.negf %161 : vector<32x16xf32>
    %163 = math.exp %162 : vector<32x16xf32>
    %cst_270 = arith.constant 1.000000e+00 : f32
    %164 = vector.broadcast %cst_270 : f32 to vector<32x16xf32>
    %165 = arith.addf %164, %163 : vector<32x16xf32>
    %166 = arith.divf %164, %165 : vector<32x16xf32>
    %cst_271 = arith.constant 1.000000e+00 : f32
    %167 = vector.broadcast %cst_271 : f32 to vector<32x16xf32>
    %168 = arith.addf %167, %166 : vector<32x16xf32>
    %c0_272 = arith.constant 0 : index
    %c0_273 = arith.constant 0 : index
    %169 = vector.load %arg6[%c0_272, %c0_273] : memref<16x128xf32, #tpu.memory_space<vmem>>, vector<16x128xf32>
    %cst_274 = arith.constant dense<0.000000e+00> : vector<32x128xf32>
    %170 = tpu.matmul %168, %169, %cst_274 {dimension_numbers = #tpu.dot_dimension_numbers<[1], [0], [0], [1], [0, 0, 1, 1], [], []>} : vector<32x16xf32>, vector<16x128xf32>, vector<32x128xf32> -> vector<32x128xf32>
    %171 = arith.mulf %79, %170 : vector<32x128xf32>
    %c0_275 = arith.constant 0 : index
    %c0_276 = arith.constant 0 : index
    %172 = vector.load %arg8[%c0_275, %c0_276] : memref<32x128xf32, #tpu.memory_space<vmem>>, vector<32x128xf32>
    tpu.vector_store %arg8[%c0_275, %c0_276], %171 {strides = array<i32>} : memref<32x128xf32, #tpu.memory_space<vmem>>, vector<32x128xf32>,
    return
  }
}

</mosaic_0001>

<llo_original>
// kernel: tpu_custom_call.1
$region0: #{tpu_custom_call.1}
  #allocation0 [shape = 'u32[]', space=smem, size = 0x4, offset = 0x4, fixed_abs, tag = 'smem constant byte address 0x4 - core index']
  #allocation1 [shape = 'u32[144,128]{1,0:T(1,128)}', space=vmem, size = 0x12000, scoped, tag = 'internal scratch']
  #allocation2 [shape = 'f32[32,256]{1,0:T(8,128)}', space=vmem, size = 0x8000, scoped, tag = 'scratch operand']
  #allocation3 [shape = 'f32[32,16]{1,0:T(8,128)}', space=vmem, size = 0x4000, scoped, tag = 'scratch operand']
  #allocation4 [shape = 'f32[32,128]{1,0:T(8,128)}', space=vmem, size = 0x4000, scoped, tag = 'scratch operand']
  #allocation5 [shape = 'f32[32,16]{1,0:T(8,128)}', space=vmem, size = 0x4000, scoped, tag = 'scratch operand']
  #allocation6 [shape = 'f32[32,128]{1,0:T(8,128)}', space=vmem, size = 0x4000, scoped, tag = 'scratch operand']
  %s0 = inlined_call_operand.vmem [shape: f32[2,4,16,16], index: 0, kind: input, shape index: {}]
  %s1 = inlined_call_operand.vmem [shape: f32[256,128], index: 1, kind: input, shape index: {}]
  %s2 = inlined_call_operand.vmem [shape: f32[1,128], index: 2, kind: input, shape index: {}]
  %s3 = inlined_call_operand.vmem [shape: f32[128,16], index: 3, kind: input, shape index: {}]
  %s4 = inlined_call_operand.vmem [shape: f32[128,16], index: 4, kind: input, shape index: {}]
  %s5 = inlined_call_operand.vmem [shape: f32[128,16], index: 5, kind: input, shape index: {}]
  %s6 = inlined_call_operand.vmem [shape: f32[16,128], index: 6, kind: input, shape index: {}]
  %s7 = inlined_call_operand.vmem [shape: f32[3], index: 7, kind: input, shape index: {}]
  %s8 = inlined_call_operand.hbm [shape: f32[32,128], index: 8, kind: output, shape index: {}]
  %s9 = sld [smem:[#allocation0]]
  $region46: #{tpu_custom_call.1} parent=0
    _
  %s11 = ssub.s32 1, %s9
  %s12 = scalar_select 0, %s11, %s9
  $region1: #{tpu_custom_call.1} parent=0
    #allocation7 [shape = 'u8[512]{0}', space=smem, size = 0x200, scoped, tag = 'input window, operand 7, single buffered']
    #allocation8 [shape = 's32[1]{0}', space=sflag, size = 0x4, scoped, tag = 'scoped memory for tpu_custom_call.1']
    #allocation9 [shape = 's32[1]{0}', space=sflag, size = 0x4, scoped, tag = 'scoped memory for tpu_custom_call.1']
    #allocation10 [shape = 'u8[16384]{0}', space=vmem, size = 0x4000, scoped, tag = 'output window, operand 0, single buffered']
    %13 = vsyncpa [#allocation9], 0
    %14 = vsyncpa [#allocation8], 0
    // Predicated region
    $region2: #{tpu_custom_call.1} parent=1 // pred_check
      _
    $region3: #{tpu_custom_call.1} parent=1 // pred_check_branch
      %16 = sbr.rel (0) target = $region5
    $region4: #{tpu_custom_call.1} parent=1 // pred_region
      _
    $region5: #{tpu_custom_call.1} parent=1 // pred_fallthru
      _
    // Predicated region
    $region6: #{tpu_custom_call.1} parent=1 // pred_check
      _
    $region7: #{tpu_custom_call.1} parent=1 // pred_check_branch
      %18 = sbr.rel (0) target = $region9
    $region8: #{tpu_custom_call.1} parent=1 // pred_region
      _
    $region9: #{tpu_custom_call.1} parent=1 // pred_fallthru
      _
    // Predicated region
    $region10: #{tpu_custom_call.1} parent=1 // pred_check
      _
    $region11: #{tpu_custom_call.1} parent=1 // pred_check_branch
      %20 = sbr.rel (0) target = $region13
    $region12: #{tpu_custom_call.1} parent=1 // pred_region
      _
    $region13: #{tpu_custom_call.1} parent=1 // pred_fallthru
      _
    // Predicated region
    $region14: #{tpu_custom_call.1} parent=1 // pred_check
      _
    $region15: #{tpu_custom_call.1} parent=1 // pred_check_branch
      %22 = sbr.rel (0) target = $region17
    $region16: #{tpu_custom_call.1} parent=1 // pred_region
      _
    $region17: #{tpu_custom_call.1} parent=1 // pred_fallthru
      _
    // Predicated region
    $region18: #{tpu_custom_call.1} parent=1 // pred_check
      _
    $region19: #{tpu_custom_call.1} parent=1 // pred_check_branch
      %24 = sbr.rel (0) target = $region21
    $region20: #{tpu_custom_call.1} parent=1 // pred_region
      _
    $region21: #{tpu_custom_call.1} parent=1 // pred_fallthru
      _
    // Predicated region
    $region22: #{tpu_custom_call.1} parent=1 // pred_check
      _
    $region23: #{tpu_custom_call.1} parent=1 // pred_check_branch
      %26 = sbr.rel (0) target = $region25
    $region24: #{tpu_custom_call.1} parent=1 // pred_region
      _
    $region25: #{tpu_custom_call.1} parent=1 // pred_fallthru
      _
    // Predicated region
    $region26: #{tpu_custom_call.1} parent=1 // pred_check
      _
    $region27: #{tpu_custom_call.1} parent=1 // pred_check_branch
      %28 = sbr.rel (0) target = $region29
    $region28: #{tpu_custom_call.1} parent=1 // pred_region
      _
    $region29: #{tpu_custom_call.1} parent=1 // pred_fallthru
      _
    // Predicated region
    $region30: #{tpu_custom_call.1} parent=1 // pred_check
      _
    $region31: #{tpu_custom_call.1} parent=1 // pred_check_branch
      %30 = sbr.rel (0) target = $region33
    $region32: #{tpu_custom_call.1} parent=1 // pred_region
      %s32 = ssub.s32 16, 16
      %33 = vsyncadd [#allocation9], %s32
      %s35 = sshll.u32 %s7, 4
      %s36 = int_to_ptr.vmem [resolvable:$true] %s35
      %38 = dma.vmem_to_smem %s36, 16, [#allocation7], [#allocation9]
    $region33: #{tpu_custom_call.1} parent=1 // pred_fallthru
      _
    // Predicated region
    $region34: #{tpu_custom_call.1} parent=1 // pred_check
      _
    $region35: #{tpu_custom_call.1} parent=1 // pred_check_branch
      %40 = sbr.rel (0) target = $region37
    $region36: #{tpu_custom_call.1} parent=1 // pred_region
      %41 = dma.done [#allocation9], 16
    $region37: #{tpu_custom_call.1} parent=1 // pred_fallthru
      _
    %42 = sfence
    %43 = vst [vmem:[#allocation2] sm:$0xff] 0.0
    %44 = vst [vmem:[#allocation2 + $0x8] sm:$0xff] 0.0
    %45 = vst [vmem:[#allocation2 + $0x10] sm:$0xff] 0.0
    %46 = vst [vmem:[#allocation2 + $0x18] sm:$0xff] 0.0
    %47 = vst [vmem:[#allocation2 + $0x20] sm:$0xff] 0.0
    %48 = vst [vmem:[#allocation2 + $0x28] sm:$0xff] 0.0
    %49 = vst [vmem:[#allocation2 + $0x30] sm:$0xff] 0.0
    %50 = vst [vmem:[#allocation2 + $0x38] sm:$0xff] 0.0
    %v51 = vld [vmem:[%s0] sm:$0xff]
    %v52 = vld [vmem:[%s0 + $0x8] sm:$0x7f]
    %vm55 = vcmask 1040384
    %v56 = vrot.slane %v51, 7
    %v57 = vrot.slane %v52, 7
    %v58 = vsel %vm55, %v56, %v57
    %vm61 = vcmask 130049
    %62 = vst.msk [vmem:[#allocation2] sm:$0xfe] %vm61, %v56
    %vm63 = vcmask 130048
    %64 = vst.msk [vmem:[#allocation2 + $0x10] sm:$0xff] %vm63, %v58
    %v65 = vld [vmem:[%s0] sm:$0xff]
    %v66 = vld [vmem:[%s0 + $0x8] sm:$0xff]
    %69 = vrot.lane.b32.xlu0 %v65, 16
    %v70 = vpop.permute.xlu0 %69
    %71 = vrot.lane.b32.xlu0 %v66, 16
    %v72 = vpop.permute.xlu0 %71
    %vm75 = vcmask 261248
    %76 = vst.msk [vmem:[#allocation2] sm:$0xff] %vm75, %v70
    %77 = vst.msk [vmem:[#allocation2 + $0x10] sm:$0xff] %vm75, %v72
    %v78 = vld [vmem:[%s0 + $0x1] sm:$0xff]
    %v79 = vld [vmem:[%s0 + $0x9] sm:$0x7f]
    %82 = vrot.lane.b32.xlu0 %v78, 32
    %v83 = vpop.permute.xlu0 %82
    %84 = vrot.lane.b32.xlu0 %v79, 32
    %v85 = vpop.permute.xlu0 %84
    %vm88 = vcmask 392448
    %89 = vst.msk [vmem:[#allocation2] sm:$0xff] %vm88, %v83
    %vm90 = vcmask 391424
    %91 = vst.msk [vmem:[#allocation2 + $0x10] sm:$0x7f] %vm90, %v85
    %s92 = scalar_lea.vmem %s0, 16
    %v93 = vld [vmem:[%s92] sm:$0xff]
    %v94 = vld [vmem:[%s92 + $0x8] sm:$0x7f]
    %v97 = vrot.slane %v93, 7
    %v98 = vrot.slane %v94, 7
    %v99 = vsel %vm55, %v97, %v98
    %100 = vrot.lane.b32.xlu0 %v97, 48
    %v101 = vpop.permute.xlu0 %100
    %102 = vrot.lane.b32.xlu0 %v99, 48
    %v103 = vpop.permute.xlu0 %102
    %vm106 = vcmask 523649
    %107 = vst.msk [vmem:[#allocation2] sm:$0xfe] %vm106, %v101
    %vm108 = vcmask 523648
    %109 = vst.msk [vmem:[#allocation2 + $0x10] sm:$0xff] %vm108, %v103
    %v110 = vld [vmem:[%s92] sm:$0xff]
    %v111 = vld [vmem:[%s92 + $0x8] sm:$0xff]
    %114 = vrot.lane.b32.xlu0 %v110, 64
    %v115 = vpop.permute.xlu0 %114
    %116 = vrot.lane.b32.xlu0 %v111, 64
    %v117 = vpop.permute.xlu0 %116
    %vm120 = vcmask 654848
    %121 = vst.msk [vmem:[#allocation2] sm:$0xff] %vm120, %v115
    %122 = vst.msk [vmem:[#allocation2 + $0x10] sm:$0xff] %vm120, %v117
    %v123 = vld [vmem:[%s92 + $0x1] sm:$0xff]
    %v124 = vld [vmem:[%s92 + $0x9] sm:$0x7f]
    %127 = vrot.lane.b32.xlu0 %v123, 80
    %v128 = vpop.permute.xlu0 %127
    %129 = vrot.lane.b32.xlu0 %v124, 80
    %v130 = vpop.permute.xlu0 %129
    %vm133 = vcmask 786048
    %134 = vst.msk [vmem:[#allocation2] sm:$0xff] %vm133, %v128
    %vm135 = vcmask 785024
    %136 = vst.msk [vmem:[#allocation2 + $0x10] sm:$0x7f] %vm135, %v130
    %s137 = scalar_lea.vmem %s0, 32
    %v138 = vld [vmem:[%s137] sm:$0xff]
    %v139 = vld [vmem:[%s137 + $0x8] sm:$0x7f]
    %v142 = vrot.slane %v138, 7
    %v143 = vrot.slane %v139, 7
    %v144 = vsel %vm55, %v142, %v143
    %145 = vrot.lane.b32.xlu0 %v142, 96
    %v146 = vpop.permute.xlu0 %145
    %147 = vrot.lane.b32.xlu0 %v144, 96
    %v148 = vpop.permute.xlu0 %147
    %vm151 = vcmask 917249
    %152 = vst.msk [vmem:[#allocation2] sm:$0xfe] %vm151, %v146
    %vm153 = vcmask 917248
    %154 = vst.msk [vmem:[#allocation2 + $0x10] sm:$0xff] %vm153, %v148
    %v155 = vld [vmem:[%s137] sm:$0xff]
    %v156 = vld [vmem:[%s137 + $0x8] sm:$0xff]
    %159 = vrot.lane.b32.xlu0 %v155, 112
    %v160 = vpop.permute.xlu0 %159
    %161 = vrot.lane.b32.xlu0 %v156, 112
    %v162 = vpop.permute.xlu0 %161
    %vm165 = vcmask 1048448
    %166 = vst.msk [vmem:[#allocation2] sm:$0xff] %vm165, %v160
    %167 = vst.msk [vmem:[#allocation2 + $0x10] sm:$0xff] %vm165, %v162
    %v168 = vld [vmem:[%s137 + $0x1] sm:$0xff]
    %v169 = vld [vmem:[%s137 + $0x9] sm:$0x7f]
    %170 = vst.msk [vmem:[#allocation2 + $0x8] sm:$0xff] %vm63, %v168
    %vm171 = vcmask 129024
    %172 = vst.msk [vmem:[#allocation2 + $0x18] sm:$0x7f] %vm171, %v169
    %s173 = scalar_lea.vmem %s0, 48
    %v174 = vld [vmem:[%s173] sm:$0xff]
    %v175 = vld [vmem:[%s173 + $0x8] sm:$0x7f]
    %v178 = vrot.slane %v174, 7
    %v179 = vrot.slane %v175, 7
    %v180 = vsel %vm55, %v178, %v179
    %181 = vrot.lane.b32.xlu0 %v178, 16
    %v182 = vpop.permute.xlu0 %181
    %183 = vrot.lane.b32.xlu0 %v180, 16
    %v184 = vpop.permute.xlu0 %183
    %vm187 = vcmask 261249
    %188 = vst.msk [vmem:[#allocation2 + $0x8] sm:$0xfe] %vm187, %v182
    %189 = vst.msk [vmem:[#allocation2 + $0x18] sm:$0xff] %vm75, %v184
    %v190 = vld [vmem:[%s173] sm:$0xff]
    %v191 = vld [vmem:[%s173 + $0x8] sm:$0xff]
    %194 = vrot.lane.b32.xlu0 %v190, 32
    %v195 = vpop.permute.xlu0 %194
    %196 = vrot.lane.b32.xlu0 %v191, 32
    %v197 = vpop.permute.xlu0 %196
    %200 = vst.msk [vmem:[#allocation2 + $0x8] sm:$0xff] %vm88, %v195
    %201 = vst.msk [vmem:[#allocation2 + $0x18] sm:$0xff] %vm88, %v197
    %v202 = vld [vmem:[%s173 + $0x1] sm:$0xff]
    %v203 = vld [vmem:[%s173 + $0x9] sm:$0x7f]
    %206 = vrot.lane.b32.xlu0 %v202, 48
    %v207 = vpop.permute.xlu0 %206
    %208 = vrot.lane.b32.xlu0 %v203, 48
    %v209 = vpop.permute.xlu0 %208
    %212 = vst.msk [vmem:[#allocation2 + $0x8] sm:$0xff] %vm108, %v207
    %vm213 = vcmask 522624
    %214 = vst.msk [vmem:[#allocation2 + $0x18] sm:$0x7f] %vm213, %v209
    %s215 = scalar_lea.vmem %s0, 64
    %v216 = vld [vmem:[%s215] sm:$0xff]
    %v217 = vld [vmem:[%s215 + $0x8] sm:$0x7f]
    %v220 = vrot.slane %v216, 7
    %v221 = vrot.slane %v217, 7
    %v222 = vsel %vm55, %v220, %v221
    %225 = vst.msk [vmem:[#allocation2 + $0x20] sm:$0xfe] %vm61, %v220
    %226 = vst.msk [vmem:[#allocation2 + $0x30] sm:$0xff] %vm63, %v222
    %v227 = vld [vmem:[%s215] sm:$0xff]
    %v228 = vld [vmem:[%s215 + $0x8] sm:$0xff]
    %231 = vrot.lane.b32.xlu0 %v227, 16
    %v232 = vpop.permute.xlu0 %231
    %233 = vrot.lane.b32.xlu0 %v228, 16
    %v234 = vpop.permute.xlu0 %233
    %237 = vst.msk [vmem:[#allocation2 + $0x20] sm:$0xff] %vm75, %v232
    %238 = vst.msk [vmem:[#allocation2 + $0x30] sm:$0xff] %vm75, %v234
    %v239 = vld [vmem:[%s215 + $0x1] sm:$0xff]
    %v240 = vld [vmem:[%s215 + $0x9] sm:$0x7f]
    %243 = vrot.lane.b32.xlu0 %v239, 32
    %v244 = vpop.permute.xlu0 %243
    %245 = vrot.lane.b32.xlu0 %v240, 32
    %v246 = vpop.permute.xlu0 %245
    %249 = vst.msk [vmem:[#allocation2 + $0x20] sm:$0xff] %vm88, %v244
    %250 = vst.msk [vmem:[#allocation2 + $0x30] sm:$0x7f] %vm90, %v246
    %s251 = scalar_lea.vmem %s0, 80
    %v252 = vld [vmem:[%s251] sm:$0xff]
    %v253 = vld [vmem:[%s251 + $0x8] sm:$0x7f]
    %v256 = vrot.slane %v252, 7
    %v257 = vrot.slane %v253, 7
    %v258 = vsel %vm55, %v256, %v257
    %259 = vrot.lane.b32.xlu0 %v256, 48
    %v260 = vpop.permute.xlu0 %259
    %261 = vrot.lane.b32.xlu0 %v258, 48
    %v262 = vpop.permute.xlu0 %261
    %265 = vst.msk [vmem:[#allocation2 + $0x20] sm:$0xfe] %vm106, %v260
    %266 = vst.msk [vmem:[#allocation2 + $0x30] sm:$0xff] %vm108, %v262
    %v267 = vld [vmem:[%s251] sm:$0xff]
    %v268 = vld [vmem:[%s251 + $0x8] sm:$0xff]
    %271 = vrot.lane.b32.xlu0 %v267, 64
    %v272 = vpop.permute.xlu0 %271
    %273 = vrot.lane.b32.xlu0 %v268, 64
    %v274 = vpop.permute.xlu0 %273
    %277 = vst.msk [vmem:[#allocation2 + $0x20] sm:$0xff] %vm120, %v272
    %278 = vst.msk [vmem:[#allocation2 + $0x30] sm:$0xff] %vm120, %v274
    %v279 = vld [vmem:[%s251 + $0x1] sm:$0xff]
    %v280 = vld [vmem:[%s251 + $0x9] sm:$0x7f]
    %283 = vrot.lane.b32.xlu0 %v279, 80
    %v284 = vpop.permute.xlu0 %283
    %285 = vrot.lane.b32.xlu0 %v280, 80
    %v286 = vpop.permute.xlu0 %285
    %289 = vst.msk [vmem:[#allocation2 + $0x20] sm:$0xff] %vm133, %v284
    %290 = vst.msk [vmem:[#allocation2 + $0x30] sm:$0x7f] %vm135, %v286
    %s291 = scalar_lea.vmem %s0, 96
    %v292 = vld [vmem:[%s291] sm:$0xff]
    %v293 = vld [vmem:[%s291 + $0x8] sm:$0x7f]
    %v296 = vrot.slane %v292, 7
    %v297 = vrot.slane %v293, 7
    %v298 = vsel %vm55, %v296, %v297
    %299 = vrot.lane.b32.xlu0 %v296, 96
    %v300 = vpop.permute.xlu0 %299
    %301 = vrot.lane.b32.xlu0 %v298, 96
    %v302 = vpop.permute.xlu0 %301
    %305 = vst.msk [vmem:[#allocation2 + $0x20] sm:$0xfe] %vm151, %v300
    %306 = vst.msk [vmem:[#allocation2 + $0x30] sm:$0xff] %vm153, %v302
    %v307 = vld [vmem:[%s291] sm:$0xff]
    %v308 = vld [vmem:[%s291 + $0x8] sm:$0xff]
    %311 = vrot.lane.b32.xlu0 %v307, 112
    %v312 = vpop.permute.xlu0 %311
    %313 = vrot.lane.b32.xlu0 %v308, 112
    %v314 = vpop.permute.xlu0 %313
    %317 = vst.msk [vmem:[#allocation2 + $0x20] sm:$0xff] %vm165, %v312
    %318 = vst.msk [vmem:[#allocation2 + $0x30] sm:$0xff] %vm165, %v314
    %v319 = vld [vmem:[%s291 + $0x1] sm:$0xff]
    %v320 = vld [vmem:[%s291 + $0x9] sm:$0x7f]
    %321 = vst.msk [vmem:[#allocation2 + $0x28] sm:$0xff] %vm63, %v319
    %322 = vst.msk [vmem:[#allocation2 + $0x38] sm:$0x7f] %vm171, %v320
    %s323 = scalar_lea.vmem %s0, 112
    %v324 = vld [vmem:[%s323] sm:$0xff]
    %v325 = vld [vmem:[%s323 + $0x8] sm:$0x7f]
    %v328 = vrot.slane %v324, 7
    %v329 = vrot.slane %v325, 7
    %v330 = vsel %vm55, %v328, %v329
    %331 = vrot.lane.b32.xlu0 %v328, 16
    %v332 = vpop.permute.xlu0 %331
    %333 = vrot.lane.b32.xlu0 %v330, 16
    %v334 = vpop.permute.xlu0 %333
    %337 = vst.msk [vmem:[#allocation2 + $0x28] sm:$0xfe] %vm187, %v332
    %338 = vst.msk [vmem:[#allocation2 + $0x38] sm:$0xff] %vm75, %v334
    %v339 = vld [vmem:[%s323] sm:$0xff]
    %v340 = vld [vmem:[%s323 + $0x8] sm:$0xff]
    %343 = vrot.lane.b32.xlu0 %v339, 32
    %v344 = vpop.permute.xlu0 %343
    %345 = vrot.lane.b32.xlu0 %v340, 32
    %v346 = vpop.permute.xlu0 %345
    %349 = vst.msk [vmem:[#allocation2 + $0x28] sm:$0xff] %vm88, %v344
    %350 = vst.msk [vmem:[#allocation2 + $0x38] sm:$0xff] %vm88, %v346
    %v351 = vld [vmem:[%s323 + $0x1] sm:$0xff]
    %v352 = vld [vmem:[%s323 + $0x9] sm:$0x7f]
    %355 = vrot.lane.b32.xlu0 %v351, 48
    %v356 = vpop.permute.xlu0 %355
    %357 = vrot.lane.b32.xlu0 %v352, 48
    %v358 = vpop.permute.xlu0 %357
    %361 = vst.msk [vmem:[#allocation2 + $0x28] sm:$0xff] %vm108, %v356
    %362 = vst.msk [vmem:[#allocation2 + $0x38] sm:$0x7f] %vm213, %v358
    %v363 = vld [vmem:[#allocation2] sm:$0xff]
    %v364 = vld [vmem:[#allocation2 + $0x8] sm:$0xff]
    %v365 = vld [vmem:[#allocation2 + $0x10] sm:$0xff]
    %v366 = vld [vmem:[#allocation2 + $0x18] sm:$0xff]
    %v367 = vld [vmem:[#allocation2 + $0x20] sm:$0xff]
    %v368 = vld [vmem:[#allocation2 + $0x28] sm:$0xff]
    %v369 = vld [vmem:[#allocation2 + $0x30] sm:$0xff]
    %v370 = vld [vmem:[#allocation2 + $0x38] sm:$0xff]
    %v371 = vld [vmem:[%s1] sm:$0xff]
    %v372 = vld [vmem:[%s1 + $0x8] sm:$0xff]
    %v373 = vld [vmem:[%s1 + $0x10] sm:$0xff]
    %v374 = vld [vmem:[%s1 + $0x18] sm:$0xff]
    %v375 = vld [vmem:[%s1 + $0x20] sm:$0xff]
    %v376 = vld [vmem:[%s1 + $0x28] sm:$0xff]
    %v377 = vld [vmem:[%s1 + $0x30] sm:$0xff]
    %v378 = vld [vmem:[%s1 + $0x38] sm:$0xff]
    %v379 = vld [vmem:[%s1 + $0x40] sm:$0xff]
    %v380 = vld [vmem:[%s1 + $0x48] sm:$0xff]
    %v381 = vld [vmem:[%s1 + $0x50] sm:$0xff]
    %v382 = vld [vmem:[%s1 + $0x58] sm:$0xff]
    %v383 = vld [vmem:[%s1 + $0x60] sm:$0xff]
    %v384 = vld [vmem:[%s1 + $0x68] sm:$0xff]
    %v385 = vld [vmem:[%s1 + $0x70] sm:$0xff]
    %v386 = vld [vmem:[%s1 + $0x78] sm:$0xff]
    %v387 = vld [vmem:[%s1 + $0x80] sm:$0xff]
    %v388 = vld [vmem:[%s1 + $0x88] sm:$0xff]
    %v389 = vld [vmem:[%s1 + $0x90] sm:$0xff]
    %v390 = vld [vmem:[%s1 + $0x98] sm:$0xff]
    %v391 = vld [vmem:[%s1 + $0xa0] sm:$0xff]
    %v392 = vld [vmem:[%s1 + $0xa8] sm:$0xff]
    %v393 = vld [vmem:[%s1 + $0xb0] sm:$0xff]
    %v394 = vld [vmem:[%s1 + $0xb8] sm:$0xff]
    %v395 = vld [vmem:[%s1 + $0xc0] sm:$0xff]
    %v396 = vld [vmem:[%s1 + $0xc8] sm:$0xff]
    %v397 = vld [vmem:[%s1 + $0xd0] sm:$0xff]
    %v398 = vld [vmem:[%s1 + $0xd8] sm:$0xff]
    %v399 = vld [vmem:[%s1 + $0xe0] sm:$0xff]
    %v400 = vld [vmem:[%s1 + $0xe8] sm:$0xff]
    %v401 = vld [vmem:[%s1 + $0xf0] sm:$0xff]
    %v402 = vld [vmem:[%s1 + $0xf8] sm:$0xff]
    %v403 = vld [vmem:[%s2] sm:$0x1]
    %v405 = vlaneseq
    %v406 = vshrl.u32 %v405, 7
    %v407 = vsub.s32 0, %v406
    %v408 = vrot.slane %v403, %v407
    %410 = vmatprep.subr.mxu0 0.0
    %411 = vmatpush1.msra.mxu0 %v371
    %412 = vmatprep.subr.mxu0 0.0
    %413 = vmatpush1.msra.mxu0 %v372
    %414 = vmatprep.subr.mxu0 0.0
    %415 = vmatpush1.msra.mxu0 %v373
    %416 = vmatprep.subr.mxu0 0.0
    %417 = vmatpush1.msra.mxu0 %v374
    %418 = vmatprep.subr.mxu0 0.0
    %419 = vmatpush1.msra.mxu0 %v375
    %420 = vmatprep.subr.mxu0 0.0
    %421 = vmatpush1.msra.mxu0 %v376
    %422 = vmatprep.subr.mxu0 0.0
    %423 = vmatpush1.msra.mxu0 %v377
    %424 = vmatprep.subr.mxu0 0.0
    %425 = vmatpush1.msra.mxu0 %v378
    %426 = vmatprep.subr.mxu0 0.0
    %427 = vmatpush1.msra.mxu0 %v379
    %428 = vmatprep.subr.mxu0 0.0
    %429 = vmatpush1.msra.mxu0 %v380
    %430 = vmatprep.subr.mxu0 0.0
    %431 = vmatpush1.msra.mxu0 %v381
    %432 = vmatprep.subr.mxu0 0.0
    %433 = vmatpush1.msra.mxu0 %v382
    %434 = vmatprep.subr.mxu0 0.0
    %435 = vmatpush1.msra.mxu0 %v383
    %436 = vmatprep.subr.mxu0 0.0
    %437 = vmatpush1.msra.mxu0 %v384
    %438 = vmatprep.subr.mxu0 0.0
    %439 = vmatpush1.msra.mxu0 %v385
    %440 = vmatprep.subr.mxu0 0.0
    %441 = vmatpush1.msra.mxu0 %v386
    %442 = vmatprep.subr.mxu0 0.0
    %443 = vmatpush1.msra.mxu0 %v387
    %444 = vmatprep.subr.mxu0 0.0
    %445 = vmatpush1.msra.mxu0 %v388
    %446 = vmatprep.subr.mxu0 0.0
    %447 = vmatpush1.msra.mxu0 %v389
    %448 = vmatprep.subr.mxu0 0.0
    %449 = vmatpush1.msra.mxu0 %v390
    %450 = vmatprep.subr.mxu0 0.0
    %451 = vmatpush1.msra.mxu0 %v391
    %452 = vmatprep.subr.mxu0 0.0
    %453 = vmatpush1.msra.mxu0 %v392
    %454 = vmatprep.subr.mxu0 0.0
    %455 = vmatpush1.msra.mxu0 %v393
    %456 = vmatprep.subr.mxu0 0.0
    %457 = vmatpush1.msra.mxu0 %v394
    %458 = vmatprep.subr.mxu0 0.0
    %459 = vmatpush1.msra.mxu0 %v395
    %460 = vmatprep.subr.mxu0 0.0
    %461 = vmatpush1.msra.mxu0 %v396
    %462 = vmatprep.subr.mxu0 0.0
    %463 = vmatpush1.msra.mxu0 %v397
    %464 = vmatprep.subr.mxu0 0.0
    %465 = vmatpush1.msra.mxu0 %v398
    %466 = vmatprep.subr.mxu0 0.0
    %467 = vmatpush1.msra.mxu0 %v399
    %468 = vmatprep.subr.mxu0 0.0
    %469 = vmatpush1.msra.mxu0 %v400
    %470 = vmatprep.subr.mxu0 0.0
    %471 = vmatpush1.msra.mxu0 %v401
    %472 = vmatprep.subr.mxu0 0.0
    %473 = vmatpush1.msra.mxu0 %v402
    %474 = vmatprep.mubr.f32.mxu0 %v364
    %475 = vmatmul.mubr.f32.gmra.mrb[0].mxu0 %v363
    %v476 = vpop.f32.mrb[0].mxu0
    %v477 = vadd.f32 %v408, %v476
    %v478 = vpop.f32.mrb[0].mxu0
    %479 = vmatprep.mubr.f32.mxu0 %v366
    %480 = vmatmul.mubr.f32.gmra.mrb[0].mxu0 %v365
    %v481 = vpop.f32.mrb[0].mxu0
    %v482 = vadd.f32 %v408, %v481
    %v483 = vpop.f32.mrb[0].mxu0
    %484 = vmatprep.mubr.f32.mxu0 %v368
    %485 = vmatmul.mubr.f32.gmra.mrb[0].mxu0 %v367
    %v486 = vpop.f32.mrb[0].mxu0
    %v487 = vadd.f32 %v408, %v486
    %v488 = vpop.f32.mrb[0].mxu0
    %489 = vmatprep.mubr.f32.mxu0 %v370
    %490 = vmatmul.mubr.f32.gmra.mrb[0].mxu0 %v369
    %v491 = vpop.f32.mrb[0].mxu0
    %v492 = vadd.f32 %v408, %v491
    %v493 = vpop.f32.mrb[0].mxu0
    %494 = vdwg.mxu0
    %v495 = vld [vmem:[%s3] sm:$0xff]
    %v496 = vld [vmem:[%s3 + $0x8] sm:$0xff]
    %v497 = vld [vmem:[%s3 + $0x10] sm:$0xff]
    %v498 = vld [vmem:[%s3 + $0x18] sm:$0xff]
    %v499 = vld [vmem:[%s3 + $0x20] sm:$0xff]
    %v500 = vld [vmem:[%s3 + $0x28] sm:$0xff]
    %v501 = vld [vmem:[%s3 + $0x30] sm:$0xff]
    %v502 = vld [vmem:[%s3 + $0x38] sm:$0xff]
    %v503 = vld [vmem:[%s3 + $0x40] sm:$0xff]
    %v504 = vld [vmem:[%s3 + $0x48] sm:$0xff]
    %v505 = vld [vmem:[%s3 + $0x50] sm:$0xff]
    %v506 = vld [vmem:[%s3 + $0x58] sm:$0xff]
    %v507 = vld [vmem:[%s3 + $0x60] sm:$0xff]
    %v508 = vld [vmem:[%s3 + $0x68] sm:$0xff]
    %v509 = vld [vmem:[%s3 + $0x70] sm:$0xff]
    %v510 = vld [vmem:[%s3 + $0x78] sm:$0xff]
    %511 = vmatprep.subr.mxu0 0.0
    %512 = vmatpush1.msra.mxu0 %v495
    %513 = vmatprep.subr.mxu0 0.0
    %514 = vmatpush1.msra.mxu0 %v496
    %515 = vmatprep.subr.mxu0 0.0
    %516 = vmatpush1.msra.mxu0 %v497
    %517 = vmatprep.subr.mxu0 0.0
    %518 = vmatpush1.msra.mxu0 %v498
    %519 = vmatprep.subr.mxu0 0.0
    %520 = vmatpush1.msra.mxu0 %v499
    %521 = vmatprep.subr.mxu0 0.0
    %522 = vmatpush1.msra.mxu0 %v500
    %523 = vmatprep.subr.mxu0 0.0
    %524 = vmatpush1.msra.mxu0 %v501
    %525 = vmatprep.subr.mxu0 0.0
    %526 = vmatpush1.msra.mxu0 %v502
    %527 = vmatprep.subr.mxu0 0.0
    %528 = vmatpush1.msra.mxu0 %v503
    %529 = vmatprep.subr.mxu0 0.0
    %530 = vmatpush1.msra.mxu0 %v504
    %531 = vmatprep.subr.mxu0 0.0
    %532 = vmatpush1.msra.mxu0 %v505
    %533 = vmatprep.subr.mxu0 0.0
    %534 = vmatpush1.msra.mxu0 %v506
    %535 = vmatprep.subr.mxu0 0.0
    %536 = vmatpush1.msra.mxu0 %v507
    %537 = vmatprep.subr.mxu0 0.0
    %538 = vmatpush1.msra.mxu0 %v508
    %539 = vmatprep.subr.mxu0 0.0
    %540 = vmatpush1.msra.mxu0 %v509
    %541 = vmatprep.subr.mxu0 0.0
    %542 = vmatpush1.msra.mxu0 %v510
    %543 = vmatprep.subr.mxu0 0.0
    %544 = vmatpush1.msra.mxu0 0.0
    %545 = vmatprep.subr.mxu0 0.0
    %546 = vmatpush1.msra.mxu0 0.0
    %547 = vmatprep.subr.mxu0 0.0
    %548 = vmatpush1.msra.mxu0 0.0
    %549 = vmatprep.subr.mxu0 0.0
    %550 = vmatpush1.msra.mxu0 0.0
    %551 = vmatprep.subr.mxu0 0.0
    %552 = vmatpush1.msra.mxu0 0.0
    %553 = vmatprep.subr.mxu0 0.0
    %554 = vmatpush1.msra.mxu0 0.0
    %555 = vmatprep.subr.mxu0 0.0
    %556 = vmatpush1.msra.mxu0 0.0
    %557 = vmatprep.subr.mxu0 0.0
    %558 = vmatpush1.msra.mxu0 0.0
    %559 = vmatprep.subr.mxu0 0.0
    %560 = vmatpush1.msra.mxu0 0.0
    %561 = vmatprep.subr.mxu0 0.0
    %562 = vmatpush1.msra.mxu0 0.0
    %563 = vmatprep.subr.mxu0 0.0
    %564 = vmatpush1.msra.mxu0 0.0
    %565 = vmatprep.subr.mxu0 0.0
    %566 = vmatpush1.msra.mxu0 0.0
    %567 = vmatprep.subr.mxu0 0.0
    %568 = vmatpush1.msra.mxu0 0.0
    %569 = vmatprep.subr.mxu0 0.0
    %570 = vmatpush1.msra.mxu0 0.0
    %571 = vmatprep.subr.mxu0 0.0
    %572 = vmatpush1.msra.mxu0 0.0
    %573 = vmatprep.subr.mxu0 0.0
    %574 = vmatpush1.msra.mxu0 0.0
    %575 = vmatprep.mubr.f32.mxu0 0.0
    %576 = vmatmul.mubr.f32.gmra.mrb[0].mxu0 %v477
    %v577 = vpop.f32.mrb[0].mxu0
    %v578 = vadd.f32 0.0, %v577
    %v579 = vpop.f32.mrb[0].mxu0
    %580 = vmatprep.mubr.f32.mxu0 0.0
    %581 = vmatmul.mubr.f32.gmra.mrb[0].mxu0 %v482
    %v582 = vpop.f32.mrb[0].mxu0
    %v583 = vadd.f32 0.0, %v582
    %v584 = vpop.f32.mrb[0].mxu0
    %585 = vmatprep.mubr.f32.mxu0 0.0
    %586 = vmatmul.mubr.f32.gmra.mrb[0].mxu0 %v487
    %v587 = vpop.f32.mrb[0].mxu0
    %v588 = vadd.f32 0.0, %v587
    %v589 = vpop.f32.mrb[0].mxu0
    %590 = vmatprep.mubr.f32.mxu0 0.0
    %591 = vmatmul.mubr.f32.gmra.mrb[0].mxu0 %v492
    %v592 = vpop.f32.mrb[0].mxu0
    %v593 = vadd.f32 0.0, %v592
    %v594 = vpop.f32.mrb[0].mxu0
    %595 = vdwg.mxu0
    %596 = vst.msk [vmem:[#allocation3] sm:$0xff] %vm63, %v578
    %597 = vst.msk [vmem:[#allocation3 + $0x8] sm:$0xff] %vm63, %v583
    %598 = vst.msk [vmem:[#allocation3 + $0x10] sm:$0xff] %vm63, %v588
    %599 = vst.msk [vmem:[#allocation3 + $0x18] sm:$0xff] %vm63, %v593
    %600 = vst [vmem:[#allocation4] sm:$0xff] 0.0
    %601 = vst [vmem:[#allocation4 + $0x8] sm:$0xff] 0.0
    %602 = vst [vmem:[#allocation4 + $0x10] sm:$0xff] 0.0
    %603 = vst [vmem:[#allocation4 + $0x18] sm:$0xff] 0.0
    %v604 = vld [vmem:[#allocation3] sm:$0xff]
    %v605 = vld [vmem:[#allocation3 + $0x8] sm:$0x1f]
    %606 = vst.msk [vmem:[#allocation4 + $0x3] sm:$0xff] %vm63, %v604
    %vm607 = vcmask 126976
    %608 = vst.msk [vmem:[#allocation4 + $0xb] sm:$0x1f] %vm607, %v605
    %v609 = vld [vmem:[#allocation3] sm:$0xff]
    %v610 = vld [vmem:[#allocation3 + $0x8] sm:$0x3f]
    %613 = vrot.lane.b32.xlu0 %v609, 16
    %v614 = vpop.permute.xlu0 %613
    %615 = vrot.lane.b32.xlu0 %v610, 16
    %v616 = vpop.permute.xlu0 %615
    %619 = vst.msk [vmem:[#allocation4 + $0x2] sm:$0xff] %vm75, %v614
    %vm620 = vcmask 259200
    %621 = vst.msk [vmem:[#allocation4 + $0xa] sm:$0x3f] %vm620, %v616
    %v622 = vld [vmem:[#allocation3] sm:$0xff]
    %v623 = vld [vmem:[#allocation3 + $0x8] sm:$0x7f]
    %626 = vrot.lane.b32.xlu0 %v622, 32
    %v627 = vpop.permute.xlu0 %626
    %628 = vrot.lane.b32.xlu0 %v623, 32
    %v629 = vpop.permute.xlu0 %628
    %632 = vst.msk [vmem:[#allocation4 + $0x1] sm:$0xff] %vm88, %v627
    %633 = vst.msk [vmem:[#allocation4 + $0x9] sm:$0x7f] %vm90, %v629
    %v634 = vld [vmem:[#allocation3] sm:$0xff]
    %v635 = vld [vmem:[#allocation3 + $0x8] sm:$0xff]
    %638 = vrot.lane.b32.xlu0 %v634, 48
    %v639 = vpop.permute.xlu0 %638
    %640 = vrot.lane.b32.xlu0 %v635, 48
    %v641 = vpop.permute.xlu0 %640
    %644 = vst.msk [vmem:[#allocation4] sm:$0xff] %vm108, %v639
    %645 = vst.msk [vmem:[#allocation4 + $0x8] sm:$0xff] %vm108, %v641
    %v646 = vld [vmem:[#allocation3 + $0x1] sm:$0xff]
    %v647 = vld [vmem:[#allocation3 + $0x9] sm:$0x7f]
    %650 = vrot.lane.b32.xlu0 %v646, 64
    %v651 = vpop.permute.xlu0 %650
    %652 = vrot.lane.b32.xlu0 %v647, 64
    %v653 = vpop.permute.xlu0 %652
    %656 = vst.msk [vmem:[#allocation4] sm:$0xff] %vm120, %v651
    %vm657 = vcmask 653824
    %658 = vst.msk [vmem:[#allocation4 + $0x8] sm:$0x7f] %vm657, %v653
    %v659 = vld [vmem:[#allocation3 + $0x2] sm:$0xff]
    %v660 = vld [vmem:[#allocation3 + $0xa] sm:$0x3f]
    %663 = vrot.lane.b32.xlu0 %v659, 80
    %v664 = vpop.permute.xlu0 %663
    %665 = vrot.lane.b32.xlu0 %v660, 80
    %v666 = vpop.permute.xlu0 %665
    %669 = vst.msk [vmem:[#allocation4] sm:$0xff] %vm133, %v664
    %vm670 = vcmask 784000
    %671 = vst.msk [vmem:[#allocation4 + $0x8] sm:$0x3f] %vm670, %v666
    %v672 = vld [vmem:[#allocation3 + $0x3] sm:$0xff]
    %v673 = vld [vmem:[#allocation3 + $0xb] sm:$0x1f]
    %676 = vrot.lane.b32.xlu0 %v672, 96
    %v677 = vpop.permute.xlu0 %676
    %678 = vrot.lane.b32.xlu0 %v673, 96
    %v679 = vpop.permute.xlu0 %678
    %682 = vst.msk [vmem:[#allocation4] sm:$0xff] %vm153, %v677
    %vm683 = vcmask 914176
    %684 = vst.msk [vmem:[#allocation4 + $0x8] sm:$0x1f] %vm683, %v679
    %v685 = vld [vmem:[#allocation3 + $0x10] sm:$0xff]
    %v686 = vld [vmem:[#allocation3 + $0x18] sm:$0x1f]
    %687 = vst.msk [vmem:[#allocation4 + $0x13] sm:$0xff] %vm63, %v685
    %688 = vst.msk [vmem:[#allocation4 + $0x1b] sm:$0x1f] %vm607, %v686
    %v689 = vld [vmem:[#allocation3 + $0x10] sm:$0xff]
    %v690 = vld [vmem:[#allocation3 + $0x18] sm:$0x3f]
    %693 = vrot.lane.b32.xlu0 %v689, 16
    %v694 = vpop.permute.xlu0 %693
    %695 = vrot.lane.b32.xlu0 %v690, 16
    %v696 = vpop.permute.xlu0 %695
    %699 = vst.msk [vmem:[#allocation4 + $0x12] sm:$0xff] %vm75, %v694
    %700 = vst.msk [vmem:[#allocation4 + $0x1a] sm:$0x3f] %vm620, %v696
    %v701 = vld [vmem:[#allocation3 + $0x10] sm:$0xff]
    %v702 = vld [vmem:[#allocation3 + $0x18] sm:$0x7f]
    %705 = vrot.lane.b32.xlu0 %v701, 32
    %v706 = vpop.permute.xlu0 %705
    %707 = vrot.lane.b32.xlu0 %v702, 32
    %v708 = vpop.permute.xlu0 %707
    %711 = vst.msk [vmem:[#allocation4 + $0x11] sm:$0xff] %vm88, %v706
    %712 = vst.msk [vmem:[#allocation4 + $0x19] sm:$0x7f] %vm90, %v708
    %v713 = vld [vmem:[#allocation3 + $0x10] sm:$0xff]
    %v714 = vld [vmem:[#allocation3 + $0x18] sm:$0xff]
    %717 = vrot.lane.b32.xlu0 %v713, 48
    %v718 = vpop.permute.xlu0 %717
    %719 = vrot.lane.b32.xlu0 %v714, 48
    %v720 = vpop.permute.xlu0 %719
    %723 = vst.msk [vmem:[#allocation4 + $0x10] sm:$0xff] %vm108, %v718
    %724 = vst.msk [vmem:[#allocation4 + $0x18] sm:$0xff] %vm108, %v720
    %v725 = vld [vmem:[#allocation3 + $0x11] sm:$0xff]
    %v726 = vld [vmem:[#allocation3 + $0x19] sm:$0x7f]
    %729 = vrot.lane.b32.xlu0 %v725, 64
    %v730 = vpop.permute.xlu0 %729
    %731 = vrot.lane.b32.xlu0 %v726, 64
    %v732 = vpop.permute.xlu0 %731
    %735 = vst.msk [vmem:[#allocation4 + $0x10] sm:$0xff] %vm120, %v730
    %736 = vst.msk [vmem:[#allocation4 + $0x18] sm:$0x7f] %vm657, %v732
    %v737 = vld [vmem:[#allocation3 + $0x12] sm:$0xff]
    %v738 = vld [vmem:[#allocation3 + $0x1a] sm:$0x3f]
    %741 = vrot.lane.b32.xlu0 %v737, 80
    %v742 = vpop.permute.xlu0 %741
    %743 = vrot.lane.b32.xlu0 %v738, 80
    %v744 = vpop.permute.xlu0 %743
    %747 = vst.msk [vmem:[#allocation4 + $0x10] sm:$0xff] %vm133, %v742
    %748 = vst.msk [vmem:[#allocation4 + $0x18] sm:$0x3f] %vm670, %v744
    %v749 = vld [vmem:[#allocation3 + $0x13] sm:$0xff]
    %v750 = vld [vmem:[#allocation3 + $0x1b] sm:$0x1f]
    %753 = vrot.lane.b32.xlu0 %v749, 96
    %v754 = vpop.permute.xlu0 %753
    %755 = vrot.lane.b32.xlu0 %v750, 96
    %v756 = vpop.permute.xlu0 %755
    %759 = vst.msk [vmem:[#allocation4 + $0x10] sm:$0xff] %vm153, %v754
    %760 = vst.msk [vmem:[#allocation4 + $0x18] sm:$0x1f] %vm683, %v756
    %v761 = vld [vmem:[#allocation4] sm:$0xff]
    %v762 = vld [vmem:[#allocation4 + $0x8] sm:$0xff]
    %v763 = vld [vmem:[#allocation4 + $0x10] sm:$0xff]
    %v764 = vld [vmem:[#allocation4 + $0x18] sm:$0xff]
    %v765 = vld [vmem:[%s4] sm:$0xff]
    %v766 = vld [vmem:[%s4 + $0x8] sm:$0xff]
    %v767 = vld [vmem:[%s4 + $0x10] sm:$0xff]
    %v768 = vld [vmem:[%s4 + $0x18] sm:$0xff]
    %v769 = vld [vmem:[%s4 + $0x20] sm:$0xff]
    %v770 = vld [vmem:[%s4 + $0x28] sm:$0xff]
    %v771 = vld [vmem:[%s4 + $0x30] sm:$0xff]
    %v772 = vld [vmem:[%s4 + $0x38] sm:$0xff]
    %v773 = vld [vmem:[%s4 + $0x40] sm:$0xff]
    %v774 = vld [vmem:[%s4 + $0x48] sm:$0xff]
    %v775 = vld [vmem:[%s4 + $0x50] sm:$0xff]
    %v776 = vld [vmem:[%s4 + $0x58] sm:$0xff]
    %v777 = vld [vmem:[%s4 + $0x60] sm:$0xff]
    %v778 = vld [vmem:[%s4 + $0x68] sm:$0xff]
    %v779 = vld [vmem:[%s4 + $0x70] sm:$0xff]
    %v780 = vld [vmem:[%s4 + $0x78] sm:$0xff]
    %s781 = sld [smem:[#allocation7]]
    %v782 = vstv %s781
    %783 = vmatprep.subr.mxu0 0.0
    %784 = vmatpush1.msra.mxu0 %v765
    %785 = vmatprep.subr.mxu0 0.0
    %786 = vmatpush1.msra.mxu0 %v766
    %787 = vmatprep.subr.mxu0 0.0
    %788 = vmatpush1.msra.mxu0 %v767
    %789 = vmatprep.subr.mxu0 0.0
    %790 = vmatpush1.msra.mxu0 %v768
    %791 = vmatprep.subr.mxu0 0.0
    %792 = vmatpush1.msra.mxu0 %v769
    %793 = vmatprep.subr.mxu0 0.0
    %794 = vmatpush1.msra.mxu0 %v770
    %795 = vmatprep.subr.mxu0 0.0
    %796 = vmatpush1.msra.mxu0 %v771
    %797 = vmatprep.subr.mxu0 0.0
    %798 = vmatpush1.msra.mxu0 %v772
    %799 = vmatprep.subr.mxu0 0.0
    %800 = vmatpush1.msra.mxu0 %v773
    %801 = vmatprep.subr.mxu0 0.0
    %802 = vmatpush1.msra.mxu0 %v774
    %803 = vmatprep.subr.mxu0 0.0
    %804 = vmatpush1.msra.mxu0 %v775
    %805 = vmatprep.subr.mxu0 0.0
    %806 = vmatpush1.msra.mxu0 %v776
    %807 = vmatprep.subr.mxu0 0.0
    %808 = vmatpush1.msra.mxu0 %v777
    %809 = vmatprep.subr.mxu0 0.0
    %810 = vmatpush1.msra.mxu0 %v778
    %811 = vmatprep.subr.mxu0 0.0
    %812 = vmatpush1.msra.mxu0 %v779
    %813 = vmatprep.subr.mxu0 0.0
    %814 = vmatpush1.msra.mxu0 %v780
    %815 = vmatprep.subr.mxu0 0.0
    %816 = vmatpush1.msra.mxu0 0.0
    %817 = vmatprep.subr.mxu0 0.0
    %818 = vmatpush1.msra.mxu0 0.0
    %819 = vmatprep.subr.mxu0 0.0
    %820 = vmatpush1.msra.mxu0 0.0
    %821 = vmatprep.subr.mxu0 0.0
    %822 = vmatpush1.msra.mxu0 0.0
    %823 = vmatprep.subr.mxu0 0.0
    %824 = vmatpush1.msra.mxu0 0.0
    %825 = vmatprep.subr.mxu0 0.0
    %826 = vmatpush1.msra.mxu0 0.0
    %827 = vmatprep.subr.mxu0 0.0
    %828 = vmatpush1.msra.mxu0 0.0
    %829 = vmatprep.subr.mxu0 0.0
    %830 = vmatpush1.msra.mxu0 0.0
    %831 = vmatprep.subr.mxu0 0.0
    %832 = vmatpush1.msra.mxu0 0.0
    %833 = vmatprep.subr.mxu0 0.0
    %834 = vmatpush1.msra.mxu0 0.0
    %835 = vmatprep.subr.mxu0 0.0
    %836 = vmatpush1.msra.mxu0 0.0
    %837 = vmatprep.subr.mxu0 0.0
    %838 = vmatpush1.msra.mxu0 0.0
    %839 = vmatprep.subr.mxu0 0.0
    %840 = vmatpush1.msra.mxu0 0.0
    %841 = vmatprep.subr.mxu0 0.0
    %842 = vmatpush1.msra.mxu0 0.0
    %843 = vmatprep.subr.mxu0 0.0
    %844 = vmatpush1.msra.mxu0 0.0
    %845 = vmatprep.subr.mxu0 0.0
    %846 = vmatpush1.msra.mxu0 0.0
    %847 = vmatprep.mubr.f32.mxu0 0.0
    %848 = vmatmul.mubr.f32.gmra.mrb[0].mxu0 %v761
    %v849 = vpop.f32.mrb[0].mxu0
    %v850 = vadd.f32 %v782, %v849
    %v851 = vpop.f32.mrb[0].mxu0
    %852 = vmatprep.mubr.f32.mxu0 0.0
    %853 = vmatmul.mubr.f32.gmra.mrb[0].mxu0 %v762
    %v854 = vpop.f32.mrb[0].mxu0
    %v855 = vadd.f32 %v782, %v854
    %v856 = vpop.f32.mrb[0].mxu0
    %857 = vmatprep.mubr.f32.mxu0 0.0
    %858 = vmatmul.mubr.f32.gmra.mrb[0].mxu0 %v763
    %v859 = vpop.f32.mrb[0].mxu0
    %v860 = vadd.f32 %v782, %v859
    %v861 = vpop.f32.mrb[0].mxu0
    %862 = vmatprep.mubr.f32.mxu0 0.0
    %863 = vmatmul.mubr.f32.gmra.mrb[0].mxu0 %v764
    %v864 = vpop.f32.mrb[0].mxu0
    %v865 = vadd.f32 %v782, %v864
    %v866 = vpop.f32.mrb[0].mxu0
    %867 = vdwg.mxu0
    %vm868 = vcmp.ge.f32.partialorder %v850, 0.0
    %vm869 = vcmp.ge.f32.partialorder %v855, 0.0
    %vm870 = vcmp.ge.f32.partialorder %v860, 0.0
    %vm871 = vcmp.ge.f32.partialorder %v865, 0.0
    %s872 = sld [smem:[#allocation7 + $0x1]]
    %v873 = vstv %s872
    %v874 = vmul.f32 %v873, %v850
    %v875 = vmul.f32 %v873, %v855
    %v876 = vmul.f32 %v873, %v860
    %v877 = vmul.f32 %v873, %v865
    %v878 = vsel %vm868, %v850, %v874
    %v879 = vsel %vm869, %v855, %v875
    %v880 = vsel %vm870, %v860, %v876
    %v881 = vsel %vm871, %v865, %v877
    %882 = vst.msk [vmem:[#allocation5] sm:$0xff] %vm63, %v878
    %883 = vst.msk [vmem:[#allocation5 + $0x8] sm:$0xff] %vm63, %v879
    %884 = vst.msk [vmem:[#allocation5 + $0x10] sm:$0xff] %vm63, %v880
    %885 = vst.msk [vmem:[#allocation5 + $0x18] sm:$0xff] %vm63, %v881
    %886 = vst [vmem:[#allocation6] sm:$0xff] 0.0
    %887 = vst [vmem:[#allocation6 + $0x8] sm:$0xff] 0.0
    %888 = vst [vmem:[#allocation6 + $0x10] sm:$0xff] 0.0
    %889 = vst [vmem:[#allocation6 + $0x18] sm:$0xff] 0.0
    %v890 = vld [vmem:[#allocation5] sm:$0xff]
    %v891 = vld [vmem:[#allocation5 + $0x8] sm:$0x3]
    %892 = vst.msk [vmem:[#allocation6 + $0x6] sm:$0xff] %vm63, %v890
    %vm893 = vcmask 123904
    %894 = vst.msk [vmem:[#allocation6 + $0xe] sm:$0x3] %vm893, %v891
    %v895 = vld [vmem:[#allocation5] sm:$0xff]
    %v896 = vld [vmem:[#allocation5 + $0x8] sm:$0xf]
    %899 = vrot.lane.b32.xlu0 %v895, 16
    %v900 = vpop.permute.xlu0 %899
    %901 = vrot.lane.b32.xlu0 %v896, 16
    %v902 = vpop.permute.xlu0 %901
    %905 = vst.msk [vmem:[#allocation6 + $0x4] sm:$0xff] %vm75, %v900
    %vm906 = vcmask 257152
    %907 = vst.msk [vmem:[#allocation6 + $0xc] sm:$0xf] %vm906, %v902
    %v908 = vld [vmem:[#allocation5] sm:$0xff]
    %v909 = vld [vmem:[#allocation5 + $0x8] sm:$0x3f]
    %912 = vrot.lane.b32.xlu0 %v908, 32
    %v913 = vpop.permute.xlu0 %912
    %914 = vrot.lane.b32.xlu0 %v909, 32
    %v915 = vpop.permute.xlu0 %914
    %918 = vst.msk [vmem:[#allocation6 + $0x2] sm:$0xff] %vm88, %v913
    %vm919 = vcmask 390400
    %920 = vst.msk [vmem:[#allocation6 + $0xa] sm:$0x3f] %vm919, %v915
    %v921 = vld [vmem:[#allocation5] sm:$0xff]
    %v922 = vld [vmem:[#allocation5 + $0x8] sm:$0xff]
    %925 = vrot.lane.b32.xlu0 %v921, 48
    %v926 = vpop.permute.xlu0 %925
    %927 = vrot.lane.b32.xlu0 %v922, 48
    %v928 = vpop.permute.xlu0 %927
    %931 = vst.msk [vmem:[#allocation6] sm:$0xff] %vm108, %v926
    %932 = vst.msk [vmem:[#allocation6 + $0x8] sm:$0xff] %vm108, %v928
    %v933 = vld [vmem:[#allocation5 + $0x2] sm:$0xff]
    %v934 = vld [vmem:[#allocation5 + $0xa] sm:$0x3f]
    %937 = vrot.lane.b32.xlu0 %v933, 64
    %v938 = vpop.permute.xlu0 %937
    %939 = vrot.lane.b32.xlu0 %v934, 64
    %v940 = vpop.permute.xlu0 %939
    %943 = vst.msk [vmem:[#allocation6] sm:$0xff] %vm120, %v938
    %vm944 = vcmask 652800
    %945 = vst.msk [vmem:[#allocation6 + $0x8] sm:$0x3f] %vm944, %v940
    %v946 = vld [vmem:[#allocation5 + $0x4] sm:$0xff]
    %v947 = vld [vmem:[#allocation5 + $0xc] sm:$0xf]
    %950 = vrot.lane.b32.xlu0 %v946, 80
    %v951 = vpop.permute.xlu0 %950
    %952 = vrot.lane.b32.xlu0 %v947, 80
    %v953 = vpop.permute.xlu0 %952
    %956 = vst.msk [vmem:[#allocation6] sm:$0xff] %vm133, %v951
    %vm957 = vcmask 781952
    %958 = vst.msk [vmem:[#allocation6 + $0x8] sm:$0xf] %vm957, %v953
    %v959 = vld [vmem:[#allocation5 + $0x6] sm:$0xff]
    %v960 = vld [vmem:[#allocation5 + $0xe] sm:$0x3]
    %963 = vrot.lane.b32.xlu0 %v959, 96
    %v964 = vpop.permute.xlu0 %963
    %965 = vrot.lane.b32.xlu0 %v960, 96
    %v966 = vpop.permute.xlu0 %965
    %969 = vst.msk [vmem:[#allocation6] sm:$0xff] %vm153, %v964
    %vm970 = vcmask 911104
    %971 = vst.msk [vmem:[#allocation6 + $0x8] sm:$0x3] %vm970, %v966
    %v972 = vld [vmem:[#allocation5 + $0x10] sm:$0xff]
    %v973 = vld [vmem:[#allocation5 + $0x18] sm:$0x3]
    %974 = vst.msk [vmem:[#allocation6 + $0x16] sm:$0xff] %vm63, %v972
    %975 = vst.msk [vmem:[#allocation6 + $0x1e] sm:$0x3] %vm893, %v973
    %v976 = vld [vmem:[#allocation5 + $0x10] sm:$0xff]
    %v977 = vld [vmem:[#allocation5 + $0x18] sm:$0xf]
    %980 = vrot.lane.b32.xlu0 %v976, 16
    %v981 = vpop.permute.xlu0 %980
    %982 = vrot.lane.b32.xlu0 %v977, 16
    %v983 = vpop.permute.xlu0 %982
    %986 = vst.msk [vmem:[#allocation6 + $0x14] sm:$0xff] %vm75, %v981
    %987 = vst.msk [vmem:[#allocation6 + $0x1c] sm:$0xf] %vm906, %v983
    %v988 = vld [vmem:[#allocation5 + $0x10] sm:$0xff]
    %v989 = vld [vmem:[#allocation5 + $0x18] sm:$0x3f]
    %992 = vrot.lane.b32.xlu0 %v988, 32
    %v993 = vpop.permute.xlu0 %992
    %994 = vrot.lane.b32.xlu0 %v989, 32
    %v995 = vpop.permute.xlu0 %994
    %998 = vst.msk [vmem:[#allocation6 + $0x12] sm:$0xff] %vm88, %v993
    %999 = vst.msk [vmem:[#allocation6 + $0x1a] sm:$0x3f] %vm919, %v995
    %v1000 = vld [vmem:[#allocation5 + $0x10] sm:$0xff]
    %v1001 = vld [vmem:[#allocation5 + $0x18] sm:$0xff]
    %1004 = vrot.lane.b32.xlu0 %v1000, 48
    %v1005 = vpop.permute.xlu0 %1004
    %1006 = vrot.lane.b32.xlu0 %v1001, 48
    %v1007 = vpop.permute.xlu0 %1006
    %1010 = vst.msk [vmem:[#allocation6 + $0x10] sm:$0xff] %vm108, %v1005
    %1011 = vst.msk [vmem:[#allocation6 + $0x18] sm:$0xff] %vm108, %v1007
    %v1012 = vld [vmem:[#allocation5 + $0x12] sm:$0xff]
    %v1013 = vld [vmem:[#allocation5 + $0x1a] sm:$0x3f]
    %1016 = vrot.lane.b32.xlu0 %v1012, 64
    %v1017 = vpop.permute.xlu0 %1016
    %1018 = vrot.lane.b32.xlu0 %v1013, 64
    %v1019 = vpop.permute.xlu0 %1018
    %1022 = vst.msk [vmem:[#allocation6 + $0x10] sm:$0xff] %vm120, %v1017
    %1023 = vst.msk [vmem:[#allocation6 + $0x18] sm:$0x3f] %vm944, %v1019
    %v1024 = vld [vmem:[#allocation5 + $0x14] sm:$0xff]
    %v1025 = vld [vmem:[#allocation5 + $0x1c] sm:$0xf]
    %1028 = vrot.lane.b32.xlu0 %v1024, 80
    %v1029 = vpop.permute.xlu0 %1028
    %1030 = vrot.lane.b32.xlu0 %v1025, 80
    %v1031 = vpop.permute.xlu0 %1030
    %1034 = vst.msk [vmem:[#allocation6 + $0x10] sm:$0xff] %vm133, %v1029
    %1035 = vst.msk [vmem:[#allocation6 + $0x18] sm:$0xf] %vm957, %v1031
    %v1036 = vld [vmem:[#allocation5 + $0x16] sm:$0xff]
    %v1037 = vld [vmem:[#allocation5 + $0x1e] sm:$0x3]
    %1040 = vrot.lane.b32.xlu0 %v1036, 96
    %v1041 = vpop.permute.xlu0 %1040
    %1042 = vrot.lane.b32.xlu0 %v1037, 96
    %v1043 = vpop.permute.xlu0 %1042
    %1046 = vst.msk [vmem:[#allocation6 + $0x10] sm:$0xff] %vm153, %v1041
    %1047 = vst.msk [vmem:[#allocation6 + $0x18] sm:$0x3] %vm970, %v1043
    %v1048 = vld [vmem:[#allocation6] sm:$0xff]
    %v1049 = vld [vmem:[#allocation6 + $0x8] sm:$0xff]
    %v1050 = vld [vmem:[#allocation6 + $0x10] sm:$0xff]
    %v1051 = vld [vmem:[#allocation6 + $0x18] sm:$0xff]
    %v1052 = vld [vmem:[%s5] sm:$0xff]
    %v1053 = vld [vmem:[%s5 + $0x8] sm:$0xff]
    %v1054 = vld [vmem:[%s5 + $0x10] sm:$0xff]
    %v1055 = vld [vmem:[%s5 + $0x18] sm:$0xff]
    %v1056 = vld [vmem:[%s5 + $0x20] sm:$0xff]
    %v1057 = vld [vmem:[%s5 + $0x28] sm:$0xff]
    %v1058 = vld [vmem:[%s5 + $0x30] sm:$0xff]
    %v1059 = vld [vmem:[%s5 + $0x38] sm:$0xff]
    %v1060 = vld [vmem:[%s5 + $0x40] sm:$0xff]
    %v1061 = vld [vmem:[%s5 + $0x48] sm:$0xff]
    %v1062 = vld [vmem:[%s5 + $0x50] sm:$0xff]
    %v1063 = vld [vmem:[%s5 + $0x58] sm:$0xff]
    %v1064 = vld [vmem:[%s5 + $0x60] sm:$0xff]
    %v1065 = vld [vmem:[%s5 + $0x68] sm:$0xff]
    %v1066 = vld [vmem:[%s5 + $0x70] sm:$0xff]
    %v1067 = vld [vmem:[%s5 + $0x78] sm:$0xff]
    %s1068 = sld [smem:[#allocation7 + $0x2]]
    %v1069 = vstv %s1068
    %1070 = vmatprep.subr.mxu0 0.0
    %1071 = vmatpush1.msra.mxu0 %v1052
    %1072 = vmatprep.subr.mxu0 0.0
    %1073 = vmatpush1.msra.mxu0 %v1053
    %1074 = vmatprep.subr.mxu0 0.0
    %1075 = vmatpush1.msra.mxu0 %v1054
    %1076 = vmatprep.subr.mxu0 0.0
    %1077 = vmatpush1.msra.mxu0 %v1055
    %1078 = vmatprep.subr.mxu0 0.0
    %1079 = vmatpush1.msra.mxu0 %v1056
    %1080 = vmatprep.subr.mxu0 0.0
    %1081 = vmatpush1.msra.mxu0 %v1057
    %1082 = vmatprep.subr.mxu0 0.0
    %1083 = vmatpush1.msra.mxu0 %v1058
    %1084 = vmatprep.subr.mxu0 0.0
    %1085 = vmatpush1.msra.mxu0 %v1059
    %1086 = vmatprep.subr.mxu0 0.0
    %1087 = vmatpush1.msra.mxu0 %v1060
    %1088 = vmatprep.subr.mxu0 0.0
    %1089 = vmatpush1.msra.mxu0 %v1061
    %1090 = vmatprep.subr.mxu0 0.0
    %1091 = vmatpush1.msra.mxu0 %v1062
    %1092 = vmatprep.subr.mxu0 0.0
    %1093 = vmatpush1.msra.mxu0 %v1063
    %1094 = vmatprep.subr.mxu0 0.0
    %1095 = vmatpush1.msra.mxu0 %v1064
    %1096 = vmatprep.subr.mxu0 0.0
    %1097 = vmatpush1.msra.mxu0 %v1065
    %1098 = vmatprep.subr.mxu0 0.0
    %1099 = vmatpush1.msra.mxu0 %v1066
    %1100 = vmatprep.subr.mxu0 0.0
    %1101 = vmatpush1.msra.mxu0 %v1067
    %1102 = vmatprep.subr.mxu0 0.0
    %1103 = vmatpush1.msra.mxu0 0.0
    %1104 = vmatprep.subr.mxu0 0.0
    %1105 = vmatpush1.msra.mxu0 0.0
    %1106 = vmatprep.subr.mxu0 0.0
    %1107 = vmatpush1.msra.mxu0 0.0
    %1108 = vmatprep.subr.mxu0 0.0
    %1109 = vmatpush1.msra.mxu0 0.0
    %1110 = vmatprep.subr.mxu0 0.0
    %1111 = vmatpush1.msra.mxu0 0.0
    %1112 = vmatprep.subr.mxu0 0.0
    %1113 = vmatpush1.msra.mxu0 0.0
    %1114 = vmatprep.subr.mxu0 0.0
    %1115 = vmatpush1.msra.mxu0 0.0
    %1116 = vmatprep.subr.mxu0 0.0
    %1117 = vmatpush1.msra.mxu0 0.0
    %1118 = vmatprep.subr.mxu0 0.0
    %1119 = vmatpush1.msra.mxu0 0.0
    %1120 = vmatprep.subr.mxu0 0.0
    %1121 = vmatpush1.msra.mxu0 0.0
    %1122 = vmatprep.subr.mxu0 0.0
    %1123 = vmatpush1.msra.mxu0 0.0
    %1124 = vmatprep.subr.mxu0 0.0
    %1125 = vmatpush1.msra.mxu0 0.0
    %1126 = vmatprep.subr.mxu0 0.0
    %1127 = vmatpush1.msra.mxu0 0.0
    %1128 = vmatprep.subr.mxu0 0.0
    %1129 = vmatpush1.msra.mxu0 0.0
    %1130 = vmatprep.subr.mxu0 0.0
    %1131 = vmatpush1.msra.mxu0 0.0
    %1132 = vmatprep.subr.mxu0 0.0
    %1133 = vmatpush1.msra.mxu0 0.0
    %1134 = vmatprep.mubr.f32.mxu0 0.0
    %1135 = vmatmul.mubr.f32.gmra.mrb[0].mxu0 %v1048
    %v1136 = vpop.f32.mrb[0].mxu0
    %v1137 = vadd.f32 %v1069, %v1136
    %v1138 = vpop.f32.mrb[0].mxu0
    %1139 = vmatprep.mubr.f32.mxu0 0.0
    %1140 = vmatmul.mubr.f32.gmra.mrb[0].mxu0 %v1049
    %v1141 = vpop.f32.mrb[0].mxu0
    %v1142 = vadd.f32 %v1069, %v1141
    %v1143 = vpop.f32.mrb[0].mxu0
    %1144 = vmatprep.mubr.f32.mxu0 0.0
    %1145 = vmatmul.mubr.f32.gmra.mrb[0].mxu0 %v1050
    %v1146 = vpop.f32.mrb[0].mxu0
    %v1147 = vadd.f32 %v1069, %v1146
    %v1148 = vpop.f32.mrb[0].mxu0
    %1149 = vmatprep.mubr.f32.mxu0 0.0
    %1150 = vmatmul.mubr.f32.gmra.mrb[0].mxu0 %v1051
    %v1151 = vpop.f32.mrb[0].mxu0
    %v1152 = vadd.f32 %v1069, %v1151
    %v1153 = vpop.f32.mrb[0].mxu0
    %1154 = vdwg.mxu0
    %v1155 = vxor.u32 %v1137, 2147483648
    %v1156 = vxor.u32 %v1142, 2147483648
    %v1157 = vxor.u32 %v1147, 2147483648
    %v1158 = vxor.u32 %v1152, 2147483648
    %v1159 = vmul.f32 %v1155, 1.442695
    %v1160 = vpow.pop %v1159
    %v1161 = vmul.f32 %v1156, 1.442695
    %v1162 = vpow.pop %v1161
    %v1163 = vmul.f32 %v1157, 1.442695
    %v1164 = vpow.pop %v1163
    %v1165 = vmul.f32 %v1158, 1.442695
    %v1166 = vpow.pop %v1165
    %v1167 = vadd.f32 %v1160, 1.0
    %v1168 = vadd.f32 %v1162, 1.0
    %v1169 = vadd.f32 %v1164, 1.0
    %v1170 = vadd.f32 %v1166, 1.0
    %v1171 = vrcp.pop %v1167
    %v1172 = vmul.f32 1.0, %v1171
    %v1173 = vrcp.pop %v1168
    %v1174 = vmul.f32 1.0, %v1173
    %v1175 = vrcp.pop %v1169
    %v1176 = vmul.f32 1.0, %v1175
    %v1177 = vrcp.pop %v1170
    %v1178 = vmul.f32 1.0, %v1177
    %v1179 = vadd.f32 %v1172, 1.0
    %v1180 = vadd.f32 %v1174, 1.0
    %v1181 = vadd.f32 %v1176, 1.0
    %v1182 = vadd.f32 %v1178, 1.0
    %v1183 = vld [vmem:[%s6] sm:$0xff]
    %v1184 = vld [vmem:[%s6 + $0x8] sm:$0xff]
    %v1186 = vsel %vm63, %v1179, 0
    %v1189 = vsel %vm63, %v1180, 0
    %v1192 = vsel %vm63, %v1181, 0
    %v1195 = vsel %vm63, %v1182, 0
    %1197 = vmatprep.subr.mxu0 0.0
    %1198 = vmatpush1.msra.mxu0 %v1183
    %1199 = vmatprep.subr.mxu0 0.0
    %1200 = vmatpush1.msra.mxu0 %v1184
    %1201 = vmatprep.subr.mxu0 0.0
    %1202 = vmatpush1.msra.mxu0 0.0
    %1203 = vmatprep.subr.mxu0 0.0
    %1204 = vmatpush1.msra.mxu0 0.0
    %1205 = vmatprep.subr.mxu0 0.0
    %1206 = vmatpush1.msra.mxu0 0.0
    %1207 = vmatprep.subr.mxu0 0.0
    %1208 = vmatpush1.msra.mxu0 0.0
    %1209 = vmatprep.subr.mxu0 0.0
    %1210 = vmatpush1.msra.mxu0 0.0
    %1211 = vmatprep.subr.mxu0 0.0
    %1212 = vmatpush1.msra.mxu0 0.0
    %1213 = vmatprep.subr.mxu0 0.0
    %1214 = vmatpush1.msra.mxu0 0.0
    %1215 = vmatprep.subr.mxu0 0.0
    %1216 = vmatpush1.msra.mxu0 0.0
    %1217 = vmatprep.subr.mxu0 0.0
    %1218 = vmatpush1.msra.mxu0 0.0
    %1219 = vmatprep.subr.mxu0 0.0
    %1220 = vmatpush1.msra.mxu0 0.0
    %1221 = vmatprep.subr.mxu0 0.0
    %1222 = vmatpush1.msra.mxu0 0.0
    %1223 = vmatprep.subr.mxu0 0.0
    %1224 = vmatpush1.msra.mxu0 0.0
    %1225 = vmatprep.subr.mxu0 0.0
    %1226 = vmatpush1.msra.mxu0 0.0
    %1227 = vmatprep.subr.mxu0 0.0
    %1228 = vmatpush1.msra.mxu0 0.0
    %1229 = vmatprep.subr.mxu0 0.0
    %1230 = vmatpush1.msra.mxu0 0.0
    %1231 = vmatprep.subr.mxu0 0.0
    %1232 = vmatpush1.msra.mxu0 0.0
    %1233 = vmatprep.subr.mxu0 0.0
    %1234 = vmatpush1.msra.mxu0 0.0
    %1235 = vmatprep.subr.mxu0 0.0
    %1236 = vmatpush1.msra.mxu0 0.0
    %1237 = vmatprep.subr.mxu0 0.0
    %1238 = vmatpush1.msra.mxu0 0.0
    %1239 = vmatprep.subr.mxu0 0.0
    %1240 = vmatpush1.msra.mxu0 0.0
    %1241 = vmatprep.subr.mxu0 0.0
    %1242 = vmatpush1.msra.mxu0 0.0
    %1243 = vmatprep.subr.mxu0 0.0
    %1244 = vmatpush1.msra.mxu0 0.0
    %1245 = vmatprep.subr.mxu0 0.0
    %1246 = vmatpush1.msra.mxu0 0.0
    %1247 = vmatprep.subr.mxu0 0.0
    %1248 = vmatpush1.msra.mxu0 0.0
    %1249 = vmatprep.subr.mxu0 0.0
    %1250 = vmatpush1.msra.mxu0 0.0
    %1251 = vmatprep.subr.mxu0 0.0
    %1252 = vmatpush1.msra.mxu0 0.0
    %1253 = vmatprep.subr.mxu0 0.0
    %1254 = vmatpush1.msra.mxu0 0.0
    %1255 = vmatprep.subr.mxu0 0.0
    %1256 = vmatpush1.msra.mxu0 0.0
    %1257 = vmatprep.subr.mxu0 0.0
    %1258 = vmatpush1.msra.mxu0 0.0
    %1259 = vmatprep.subr.mxu0 0.0
    %1260 = vmatpush1.msra.mxu0 0.0
    %1261 = vmatprep.mubr.f32.mxu0 0.0
    %1262 = vmatmul.mubr.f32.gmra.mrb[0].mxu0 %v1186
    %v1263 = vpop.f32.mrb[0].mxu0
    %v1264 = vadd.f32 0.0, %v1263
    %v1265 = vpop.f32.mrb[0].mxu0
    %1266 = vmatprep.mubr.f32.mxu0 0.0
    %1267 = vmatmul.mubr.f32.gmra.mrb[0].mxu0 %v1189
    %v1268 = vpop.f32.mrb[0].mxu0
    %v1269 = vadd.f32 0.0, %v1268
    %v1270 = vpop.f32.mrb[0].mxu0
    %1271 = vmatprep.mubr.f32.mxu0 0.0
    %1272 = vmatmul.mubr.f32.gmra.mrb[0].mxu0 %v1192
    %v1273 = vpop.f32.mrb[0].mxu0
    %v1274 = vadd.f32 0.0, %v1273
    %v1275 = vpop.f32.mrb[0].mxu0
    %1276 = vmatprep.mubr.f32.mxu0 0.0
    %1277 = vmatmul.mubr.f32.gmra.mrb[0].mxu0 %v1195
    %v1278 = vpop.f32.mrb[0].mxu0
    %v1279 = vadd.f32 0.0, %v1278
    %v1280 = vpop.f32.mrb[0].mxu0
    %1281 = vdwg.mxu0
    %v1282 = vmul.f32 %v477, %v1264
    %v1283 = vmul.f32 %v482, %v1269
    %v1284 = vmul.f32 %v487, %v1274
    %v1285 = vmul.f32 %v492, %v1279
    %1286 = vst [vmem:[#allocation10] sm:$0xff] %v1282
    %1287 = vst [vmem:[#allocation10 + $0x8] sm:$0xff] %v1283
    %1288 = vst [vmem:[#allocation10 + $0x10] sm:$0xff] %v1284
    %1289 = vst [vmem:[#allocation10 + $0x18] sm:$0xff] %v1285
    // Predicated region
    $region38: #{tpu_custom_call.1} parent=1 // pred_check
      _
    $region39: #{tpu_custom_call.1} parent=1 // pred_check_branch
      %1291 = sbr.rel (0) target = $region41
    $region40: #{tpu_custom_call.1} parent=1 // pred_region
      %s1293 = ssub.s32 512, 512
      %1294 = vsyncadd [#allocation8], %s1293
      %s1295 = sshll.u32 [#allocation10], 4
      %s1296 = int_to_ptr.vmem [resolvable:$true] %s1295
      %1301 = dma.vmem_to_hbm [thread:$0]  %s1296, 512, %s8, [#allocation8], 128, 128, 8
    $region41: #{tpu_custom_call.1} parent=1 // pred_fallthru
      _
    // Predicated region
    $region42: #{tpu_custom_call.1} parent=1 // pred_check
      _
    $region43: #{tpu_custom_call.1} parent=1 // pred_check_branch
      %1303 = sbr.rel (0) target = $region45
    $region44: #{tpu_custom_call.1} parent=1 // pred_region
      %1304 = dma.done [#allocation8], 512
    $region45: #{tpu_custom_call.1} parent=1 // pred_fallthru
      _
    %1305 = vsyncpa [#allocation8], 1
    %1306 = vsyncpa [#allocation9], 1

</llo_original>
